<compile_context>
chip_gen: v6e
topology: v6e:2x2x1
jax: 0.10.0
libtpu: 0.0.40
codegen_flags: <defaults>
</compile_context>

<pallas_src>
import math

import jax
import jax.numpy as jnp
from jax.experimental import pallas as pl
from jax.experimental.pallas import tpu as pltpu

D_MODEL = 32
NHEAD = 4
HEAD_DIM = D_MODEL // NHEAD
DIM_FF = 64
EPS = 1e-5  # nn.LayerNorm default

# ---- packed-parameter layout (all offsets are 128-lane aligned, so every
# ---- in-kernel slice starts on a lane-tile boundary -> no relayout) -------
_MAT_ROWS, _MAT_COLS = DIM_FF, 4 * 128          # (64, 512) matrix slab
_VEC_COLS = 8 * 128                             # (1, 1024) vector slab
_W_QKV_OFF, _W_O_OFF, _W_1_OFF, _W_2_OFF = 0, 128, 256, 384
_B_QKV_OFF, _B_O_OFF, _G1_OFF, _BE1_OFF = 0, 128, 256, 384
_B1_OFF, _B2_OFF, _G2_OFF, _BE2_OFF = 512, 640, 768, 896


# ---------------------------------------------------------------- helpers
def _full_spec(shape):
    """Whole-array block, reused at the single grid step."""
    nd = len(shape)
    return pl.BlockSpec(tuple(shape), lambda i, nd=nd: (0,) * nd)


def _layernorm(x, g, b):
    mu = jnp.mean(x, axis=-1, keepdims=True)
    var = jnp.mean(jnp.square(x - mu), axis=-1, keepdims=True)
    return (x - mu) * jax.lax.rsqrt(var + EPS) * g + b


# ---------------------------------------------------------------- fused kernel
def _encoder_layer_kernel(src_ref, pos_ref, wmat_ref, vec_ref, o_ref):
    src = src_ref[...]                      # (B, S, D)
    pos = pos_ref[...]
    B, S, D = src.shape
    L = B * S

    x2 = src.reshape(L, D)                  # residual / value stream
    q2 = x2 + pos.reshape(L, D)             # with_pos_embed(src, pos)

    # ---- carve up packed parameters (static, tile-aligned slices) --------
    w_qkv = wmat_ref[0:D, _W_QKV_OFF:_W_QKV_OFF + 3 * D]   # (32, 96) [Wq*s|Wk|Wv]
    w_o = wmat_ref[0:D, _W_O_OFF:_W_O_OFF + D]             # (32, 32)
    w_1 = wmat_ref[0:D, _W_1_OFF:_W_1_OFF + DIM_FF]        # (32, 64)
    w_2 = wmat_ref[0:DIM_FF, _W_2_OFF:_W_2_OFF + D]        # (64, 32)

    b_qkv = vec_ref[:, _B_QKV_OFF:_B_QKV_OFF + 3 * D]      # (1, 96)
    b_o = vec_ref[:, _B_O_OFF:_B_O_OFF + D]
    g1 = vec_ref[:, _G1_OFF:_G1_OFF + D]
    be1 = vec_ref[:, _BE1_OFF:_BE1_OFF + D]
    b_1 = vec_ref[:, _B1_OFF:_B1_OFF + DIM_FF]
    b_2 = vec_ref[:, _B2_OFF:_B2_OFF + D]
    g2 = vec_ref[:, _G2_OFF:_G2_OFF + D]
    be2 = vec_ref[:, _BE2_OFF:_BE2_OFF + D]

    # ---- fused Q|K|V projection: ONE MXU pass ------------------------------
    # rows 0:L carry (src+pos) -> Q,K columns; rows L:2L carry src -> V columns.
    # The discarded cross blocks sit in MXU tile padding anyway.
    stacked = jnp.concatenate([q2, x2], axis=0)             # (2L, D)
    proj = jnp.dot(stacked, w_qkv, preferred_element_type=jnp.float32)  # (2L, 3D)
    qk = proj[:L, :2 * D] + b_qkv[:, :2 * D]
    qp = qk[:, :D].reshape(B, S, D)         # 1/sqrt(head_dim) folded into Wq/bq
    kp = qk[:, D:].reshape(B, S, D)
    vp = (proj[L:, 2 * D:] + b_qkv[:, 2 * D:]).reshape(B, S, D)

    # ---- multi-head self-attention (stand-in for Box3dAttention) -----------
    heads = []
    for h in range(NHEAD):                  # static unroll, NHEAD = 4
        lo = h * HEAD_DIM
        qh = qp[:, :, lo:lo + HEAD_DIM]
        kh = kp[:, :, lo:lo + HEAD_DIM]
        vh = vp[:, :, lo:lo + HEAD_DIM]
        s = jnp.einsum('bqd,bkd->bqk', qh, kh,
                       preferred_element_type=jnp.float32)       # (B, S, S)
        s = s - jnp.max(s, axis=-1, keepdims=True)
        p = jnp.exp(s)
        p = p * pl.reciprocal(jnp.sum(p, axis=-1, keepdims=True), approx=False)
        heads.append(jnp.einsum('bqk,bkd->bqd', p, vh,
                                preferred_element_type=jnp.float32))
    # Single output-projection dot over all heads (no per-head K=8 matmuls).
    o_heads = jnp.concatenate(heads, axis=-1).reshape(L, D)       # (L, 32)
    attn = jnp.dot(o_heads, w_o, preferred_element_type=jnp.float32) + b_o

    # ---- residual + norm1 ---------------------------------------------------
    x = _layernorm(x2 + attn, g1, be1)

    # ---- FFN: linear2(relu(linear1(x))) -------------------------------------
    hdn = jnp.maximum(
        jnp.dot(x, w_1, preferred_element_type=jnp.float32) + b_1, 0.0)
    y = jnp.dot(hdn, w_2, preferred_element_type=jnp.float32) + b_2

    # ---- residual + norm2 ----------------------------------------------------
    o_ref[...] = _layernorm(x + y, g2, be2).reshape(B, S, D)


# ---------------------------------------------------------------- wrapper
def transformer_encoder_layer_forward(packed_params, src, pos, src_shape=None,
                                      src_start_idx=None, ref_windows=None):
    """Forward of ConQueR TransformerEncoderLayer (eval mode, relu activation)."""
    del src_shape, src_start_idx, ref_windows  # Box3dAttention-only (see TODO above)
    if pos is None:
        pos = jnp.zeros_like(src)
    wmat, vec = packed_params
    B, S, D = src.shape
    args = (src, pos, wmat, vec)                # 4 inputs (2 DMAs for all params)
    return pl.pallas_call(
        _encoder_layer_kernel,
        out_shape=jax.ShapeDtypeStruct((B, S, D), jnp.float32),
        grid=(1,),
        in_specs=[_full_spec(a.shape) for a in args],
        out_specs=_full_spec((B, S, D)),
        compiler_params=pltpu.CompilerParams(dimension_semantics=("arbitrary",)),
    )(*args)


# ---------------------------------------------------------------- params
def init_params(key):
    keys = jax.random.split(key, 12)
    ki = iter(keys)

    def lin(din, dout, scale=0.05):
        w = jax.random.normal(next(ki), (din, dout), jnp.float32) * scale
        b = jax.random.normal(next(ki), (dout,), jnp.float32) * scale
        return w, b

    wq, bq = lin(D_MODEL, D_MODEL)
    wk, bk = lin(D_MODEL, D_MODEL)
    wv, bv = lin(D_MODEL, D_MODEL)
    wo, bo = lin(D_MODEL, D_MODEL)
    g1 = jnp.ones((D_MODEL,), jnp.float32)
    be1 = jnp.zeros((D_MODEL,), jnp.float32)
    w1, b1 = lin(D_MODEL, DIM_FF)
    w2, b2 = lin(DIM_FF, D_MODEL)
    g2 = jnp.ones((D_MODEL,), jnp.float32)
    be2 = jnp.zeros((D_MODEL,), jnp.float32)
    return (wq, bq, wk, bk, wv, bv, wo, bo, g1, be1, w1, b1, w2, b2, g2, be2)


def pack_params(params):
    """One-time host-side packing: fold attention scale into Wq/bq and
    concatenate all params into two tile-aligned VMEM slabs."""
    (wq, bq, wk, bk, wv, bv, wo, bo,
     g1, be1, w1, b1, w2, b2, g2, be2) = params
    scale = 1.0 / math.sqrt(HEAD_DIM)

    wmat = jnp.zeros((_MAT_ROWS, _MAT_COLS), jnp.float32)
    wmat = wmat.at[:D_MODEL, _W_QKV_OFF:_W_QKV_OFF + D_MODEL].set(wq * scale)
    wmat = wmat.at[:D_MODEL, _W_QKV_OFF + D_MODEL:_W_QKV_OFF + 2 * D_MODEL].set(wk)
    wmat = wmat.at[:D_MODEL, _W_QKV_OFF + 2 * D_MODEL:_W_QKV_OFF + 3 * D_MODEL].set(wv)
    wmat = wmat.at[:D_MODEL, _W_O_OFF:_W_O_OFF + D_MODEL].set(wo)
    wmat = wmat.at[:D_MODEL, _W_1_OFF:_W_1_OFF + DIM_FF].set(w1)
    wmat = wmat.at[:DIM_FF, _W_2_OFF:_W_2_OFF + D_MODEL].set(w2)

    vec = jnp.zeros((1, _VEC_COLS), jnp.float32)
    vec = vec.at[0, _B_QKV_OFF:_B_QKV_OFF + D_MODEL].set(bq * scale)
    vec = vec.at[0, _B_QKV_OFF + D_MODEL:_B_QKV_OFF + 2 * D_MODEL].set(bk)
    vec = vec.at[0, _B_QKV_OFF + 2 * D_MODEL:_B_QKV_OFF + 3 * D_MODEL].set(bv)
    vec = vec.at[0, _B_O_OFF:_B_O_OFF + D_MODEL].set(bo)
    vec = vec.at[0, _G1_OFF:_G1_OFF + D_MODEL].set(g1)
    vec = vec.at[0, _BE1_OFF:_BE1_OFF + D_MODEL].set(be1)
    vec = vec.at[0, _B1_OFF:_B1_OFF + DIM_FF].set(b1)
    vec = vec.at[0, _B2_OFF:_B2_OFF + D_MODEL].set(b2)
    vec = vec.at[0, _G2_OFF:_G2_OFF + D_MODEL].set(g2)
    vec = vec.at[0, _BE2_OFF:_BE2_OFF + D_MODEL].set(be2)
    return wmat, vec


# ---------------------------------------------------------------- reference
def _reference_forward(params, src, pos):
    """Pure-JAX reference of the same math (full-precision matmuls)."""
    (wq, bq, wk, bk, wv, bv, wo, bo,
     g1, be1, w1, b1, w2, b2, g2, be2) = params
    B, S, D = src.shape
    with jax.default_matmul_precision("highest"):
        q_in = src + pos
        q = q_in @ wq + bq
        k = q_in @ wk + bk
        v = src @ wv + bv

        def split(x):  # (B, S, D) -> (B, H, S, hd)
            return x.reshape(B, S, NHEAD, HEAD_DIM).transpose(0, 2, 1, 3)

        qh, kh, vh = split(q), split(k), split(v)
        s = jnp.einsum('bhqd,bhkd->bhqk', qh, kh) / math.sqrt(HEAD_DIM)
        p = jax.nn.softmax(s, axis=-1)
        o = jnp.einsum('bhqk,bhkd->bhqd', p, vh).transpose(0, 2, 1, 3).reshape(B, S, D)
        attn = o @ wo + bo

        def ln(x, g, b):
            mu = x.mean(-1, keepdims=True)
            var = ((x - mu) ** 2).mean(-1, keepdims=True)
            return (x - mu) * jax.lax.rsqrt(var + EPS) * g + b

        x = ln(src + attn, g1, be1)
        y = jnp.maximum(x @ w1 + b1, 0.0) @ w2 + b2
        return ln(x + y, g2, be2)


# ---------------------------------------------------------------- main
if __name__ == "__main__":
    key = jax.random.PRNGKey(0)
    kp, ks, kpos, kr = jax.random.split(key, 4)
    params = init_params(kp)
    packed = pack_params(params)   # one-time weight transform + packing

    B, S = 2, 16                                    # batch, sequence (BEV tokens)
    src = jax.random.normal(ks, (B, S, D_MODEL), jnp.float32)
    pos = jax.random.normal(kpos, (B, S, D_MODEL), jnp.float32)
    src_shape = jnp.array([[4, 4]], jnp.int32)                    # unused by stand-in attn
    src_start_idx = jnp.array([0], jnp.int32)                     # unused by stand-in attn
    ref_windows = jax.random.normal(kr, (B, S, 7), jnp.float32)   # unused by stand-in attn

    out = transformer_encoder_layer_forward(packed, src, pos, src_shape,
                                            src_start_idx, ref_windows)
    out = jax.block_until_ready(out)
    assert out.shape == (B, S, D_MODEL) and out.dtype == jnp.float32

    ref = _reference_forward(params, src, pos)
    assert bool(jnp.all(jnp.isfinite(out)))
    err = float(jnp.max(jnp.abs(out - ref)))
    assert err < 1e-4, f"max abs err {err}"
    print("KERNEL_OK")
</pallas_src>

<mosaic_0001>
module attributes {stable_mosaic.version = 11 : i64} {
  func.func @_encoder_layer_kernel(%arg0: i32, %arg1: memref<2x16x32xf32, #tpu.memory_space<vmem>>, %arg2: memref<2x16x32xf32, #tpu.memory_space<vmem>>, %arg3: memref<64x512xf32, #tpu.memory_space<vmem>>, %arg4: memref<1x1024xf32, #tpu.memory_space<vmem>>, %arg5: memref<2x16x32xf32, #tpu.memory_space<vmem>>) attributes {dimension_semantics = [#tpu.dimension_semantics<arbitrary>], iteration_bounds = array<i64: 1>, scalar_prefetch = 0 : i64, scratch_operands = 0 : i64, tpu.core_type = #tpu.core_type<tc>, window_params = [{pipeline_mode = #tpu.pipeline_mode<synchronous>, transform_indices = @transform_0, window_bounds = array<i64: 2, 16, 32>}, {pipeline_mode = #tpu.pipeline_mode<synchronous>, transform_indices = @transform_1, window_bounds = array<i64: 2, 16, 32>}, {pipeline_mode = #tpu.pipeline_mode<synchronous>, transform_indices = @transform_2, window_bounds = array<i64: 64, 512>}, {pipeline_mode = #tpu.pipeline_mode<synchronous>, transform_indices = @transform_3, window_bounds = array<i64: 1, 1024>}, {pipeline_mode = #tpu.pipeline_mode<synchronous>, transform_indices = @transform_4, window_bounds = array<i64: 2, 16, 32>}]} {
    %c0 = arith.constant 0 : index
    %c0_0 = arith.constant 0 : index
    %c0_1 = arith.constant 0 : index
    %0 = vector.load %arg1[%c0, %c0_0, %c0_1] : memref<2x16x32xf32, #tpu.memory_space<vmem>>, vector<2x16x32xf32>
    %c0_2 = arith.constant 0 : index
    %c0_3 = arith.constant 0 : index
    %c0_4 = arith.constant 0 : index
    %1 = vector.load %arg2[%c0_2, %c0_3, %c0_4] : memref<2x16x32xf32, #tpu.memory_space<vmem>>, vector<2x16x32xf32>
    %2 = vector.shape_cast %0 : vector<2x16x32xf32> to vector<32x32xf32>
    %3 = vector.shape_cast %1 : vector<2x16x32xf32> to vector<32x32xf32>
    %4 = arith.addf %2, %3 : vector<32x32xf32>
    %c0_5 = arith.constant 0 : index
    %c0_6 = arith.constant 0 : index
    %5 = vector.load %arg3[%c0_5, %c0_6] : memref<64x512xf32, #tpu.memory_space<vmem>>, vector<32x96xf32>
    %c0_7 = arith.constant 0 : index
    %c128 = arith.constant 128 : index
    %6 = vector.load %arg3[%c0_7, %c128] : memref<64x512xf32, #tpu.memory_space<vmem>>, vector<32x32xf32>
    %c0_8 = arith.constant 0 : index
    %c256 = arith.constant 256 : index
    %7 = vector.load %arg3[%c0_8, %c256] : memref<64x512xf32, #tpu.memory_space<vmem>>, vector<32x64xf32>
    %c0_9 = arith.constant 0 : index
    %c384 = arith.constant 384 : index
    %8 = vector.load %arg3[%c0_9, %c384] : memref<64x512xf32, #tpu.memory_space<vmem>>, vector<64x32xf32>
    %c0_10 = arith.constant 0 : index
    %c0_11 = arith.constant 0 : index
    %9 = vector.load %arg4[%c0_10, %c0_11] : memref<1x1024xf32, #tpu.memory_space<vmem>>, vector<1x96xf32>
    %c0_12 = arith.constant 0 : index
    %c128_13 = arith.constant 128 : index
    %10 = vector.load %arg4[%c0_12, %c128_13] : memref<1x1024xf32, #tpu.memory_space<vmem>>, vector<1x32xf32>
    %c0_14 = arith.constant 0 : index
    %c256_15 = arith.constant 256 : index
    %11 = vector.load %arg4[%c0_14, %c256_15] : memref<1x1024xf32, #tpu.memory_space<vmem>>, vector<1x32xf32>
    %c0_16 = arith.constant 0 : index
    %c384_17 = arith.constant 384 : index
    %12 = vector.load %arg4[%c0_16, %c384_17] : memref<1x1024xf32, #tpu.memory_space<vmem>>, vector<1x32xf32>
    %c0_18 = arith.constant 0 : index
    %c512 = arith.constant 512 : index
    %13 = vector.load %arg4[%c0_18, %c512] : memref<1x1024xf32, #tpu.memory_space<vmem>>, vector<1x64xf32>
    %c0_19 = arith.constant 0 : index
    %c640 = arith.constant 640 : index
    %14 = vector.load %arg4[%c0_19, %c640] : memref<1x1024xf32, #tpu.memory_space<vmem>>, vector<1x32xf32>
    %c0_20 = arith.constant 0 : index
    %c768 = arith.constant 768 : index
    %15 = vector.load %arg4[%c0_20, %c768] : memref<1x1024xf32, #tpu.memory_space<vmem>>, vector<1x32xf32>
    %c0_21 = arith.constant 0 : index
    %c896 = arith.constant 896 : index
    %16 = vector.load %arg4[%c0_21, %c896] : memref<1x1024xf32, #tpu.memory_space<vmem>>, vector<1x32xf32>
    %17 = tpu.concatenate %4, %2 in 0 : vector<32x32xf32>, vector<32x32xf32> -> vector<64x32xf32>
    %cst = arith.constant dense<0.000000e+00> : vector<64x96xf32>
    %18 = tpu.matmul %17, %5, %cst {dimension_numbers = #tpu.dot_dimension_numbers<[1], [0], [0], [1], [0, 0, 1, 1], [], []>} : vector<64x32xf32>, vector<32x96xf32>, vector<64x96xf32> -> vector<64x96xf32>
    %19 = vector.extract_strided_slice %18 {offsets = [0, 0], sizes = [32, 64], strides = [1, 1]} : vector<64x96xf32> to vector<32x64xf32>
    %20 = vector.extract_strided_slice %9 {offsets = [0, 0], sizes = [1, 64], strides = [1, 1]} : vector<1x96xf32> to vector<1x64xf32>
    %21 = vector.broadcast %20 : vector<1x64xf32> to vector<32x64xf32>
    %22 = arith.addf %19, %21 : vector<32x64xf32>
    %23 = vector.extract_strided_slice %22 {offsets = [0, 0], sizes = [32, 32], strides = [1, 1]} : vector<32x64xf32> to vector<32x32xf32>
    %24 = vector.shape_cast %23 : vector<32x32xf32> to vector<2x16x32xf32>
    %25 = vector.extract_strided_slice %22 {offsets = [0, 32], sizes = [32, 32], strides = [1, 1]} : vector<32x64xf32> to vector<32x32xf32>
    %26 = vector.shape_cast %25 : vector<32x32xf32> to vector<2x16x32xf32>
    %27 = vector.extract_strided_slice %18 {offsets = [32, 64], sizes = [32, 32], strides = [1, 1]} : vector<64x96xf32> to vector<32x32xf32>
    %28 = vector.extract_strided_slice %9 {offsets = [0, 64], sizes = [1, 32], strides = [1, 1]} : vector<1x96xf32> to vector<1x32xf32>
    %29 = vector.broadcast %28 : vector<1x32xf32> to vector<32x32xf32>
    %30 = arith.addf %27, %29 : vector<32x32xf32>
    %31 = vector.shape_cast %30 : vector<32x32xf32> to vector<2x16x32xf32>
    %32 = vector.extract_strided_slice %24 {offsets = [0, 0, 0], sizes = [2, 16, 8], strides = [1, 1, 1]} : vector<2x16x32xf32> to vector<2x16x8xf32>
    %33 = vector.extract_strided_slice %26 {offsets = [0, 0, 0], sizes = [2, 16, 8], strides = [1, 1, 1]} : vector<2x16x32xf32> to vector<2x16x8xf32>
    %34 = vector.extract_strided_slice %31 {offsets = [0, 0, 0], sizes = [2, 16, 8], strides = [1, 1, 1]} : vector<2x16x32xf32> to vector<2x16x8xf32>
    "tpu.trace_start"() <{level = 10 : i32, message = "bqd,bkd->bqk"}> : () -> ()
    %cst_22 = arith.constant dense<0.000000e+00> : vector<2x16x16xf32>
    %35 = tpu.matmul %32, %33, %cst_22 {dimension_numbers = #tpu.dot_dimension_numbers<[2], [2], [1], [1], [0, 0, 0, 1, 1, 1], [0], [0]>} : vector<2x16x8xf32>, vector<2x16x8xf32>, vector<2x16x16xf32> -> vector<2x16x16xf32>
    "tpu.trace_stop"() : () -> ()
    %cst_23 = arith.constant dense<0xFF800000> : vector<2x16xf32>
    %36 = vector.multi_reduction <maximumf>, %35, %cst_23 [2] : vector<2x16x16xf32> to vector<2x16xf32>
    %37 = vector.shape_cast %36 : vector<2x16xf32> to vector<2x16x1xf32>
    %38 = vector.broadcast %37 : vector<2x16x1xf32> to vector<2x16x16xf32>
    %39 = arith.subf %35, %38 : vector<2x16x16xf32>
    %40 = math.exp %39 : vector<2x16x16xf32>
    %cst_24 = arith.constant dense<0.000000e+00> : vector<2x16xf32>
    %41 = vector.multi_reduction <add>, %40, %cst_24 [2] : vector<2x16x16xf32> to vector<2x16xf32>
    %42 = vector.shape_cast %41 : vector<2x16xf32> to vector<2x16x1xf32>
    %43 = tpu.reciprocal %42 : vector<2x16x1xf32> -> vector<2x16x1xf32>
    %44 = vector.broadcast %43 : vector<2x16x1xf32> to vector<2x16x16xf32>
    %45 = arith.mulf %40, %44 : vector<2x16x16xf32>
    "tpu.trace_start"() <{level = 10 : i32, message = "bqk,bkd->bqd"}> : () -> ()
    %cst_25 = arith.constant dense<0.000000e+00> : vector<2x16x8xf32>
    %46 = tpu.matmul %45, %34, %cst_25 {dimension_numbers = #tpu.dot_dimension_numbers<[2], [1], [1], [2], [0, 0, 0, 1, 1, 2], [0], [0]>} : vector<2x16x16xf32>, vector<2x16x8xf32>, vector<2x16x8xf32> -> vector<2x16x8xf32>
    "tpu.trace_stop"() : () -> ()
    %47 = vector.extract_strided_slice %24 {offsets = [0, 0, 8], sizes = [2, 16, 8], strides = [1, 1, 1]} : vector<2x16x32xf32> to vector<2x16x8xf32>
    %48 = vector.extract_strided_slice %26 {offsets = [0, 0, 8], sizes = [2, 16, 8], strides = [1, 1, 1]} : vector<2x16x32xf32> to vector<2x16x8xf32>
    %49 = vector.extract_strided_slice %31 {offsets = [0, 0, 8], sizes = [2, 16, 8], strides = [1, 1, 1]} : vector<2x16x32xf32> to vector<2x16x8xf32>
    "tpu.trace_start"() <{level = 10 : i32, message = "bqd,bkd->bqk"}> : () -> ()
    %cst_26 = arith.constant dense<0.000000e+00> : vector<2x16x16xf32>
    %50 = tpu.matmul %47, %48, %cst_26 {dimension_numbers = #tpu.dot_dimension_numbers<[2], [2], [1], [1], [0, 0, 0, 1, 1, 1], [0], [0]>} : vector<2x16x8xf32>, vector<2x16x8xf32>, vector<2x16x16xf32> -> vector<2x16x16xf32>
    "tpu.trace_stop"() : () -> ()
    %cst_27 = arith.constant dense<0xFF800000> : vector<2x16xf32>
    %51 = vector.multi_reduction <maximumf>, %50, %cst_27 [2] : vector<2x16x16xf32> to vector<2x16xf32>
    %52 = vector.shape_cast %51 : vector<2x16xf32> to vector<2x16x1xf32>
    %53 = vector.broadcast %52 : vector<2x16x1xf32> to vector<2x16x16xf32>
    %54 = arith.subf %50, %53 : vector<2x16x16xf32>
    %55 = math.exp %54 : vector<2x16x16xf32>
    %cst_28 = arith.constant dense<0.000000e+00> : vector<2x16xf32>
    %56 = vector.multi_reduction <add>, %55, %cst_28 [2] : vector<2x16x16xf32> to vector<2x16xf32>
    %57 = vector.shape_cast %56 : vector<2x16xf32> to vector<2x16x1xf32>
    %58 = tpu.reciprocal %57 : vector<2x16x1xf32> -> vector<2x16x1xf32>
    %59 = vector.broadcast %58 : vector<2x16x1xf32> to vector<2x16x16xf32>
    %60 = arith.mulf %55, %59 : vector<2x16x16xf32>
    "tpu.trace_start"() <{level = 10 : i32, message = "bqk,bkd->bqd"}> : () -> ()
    %cst_29 = arith.constant dense<0.000000e+00> : vector<2x16x8xf32>
    %61 = tpu.matmul %60, %49, %cst_29 {dimension_numbers = #tpu.dot_dimension_numbers<[2], [1], [1], [2], [0, 0, 0, 1, 1, 2], [0], [0]>} : vector<2x16x16xf32>, vector<2x16x8xf32>, vector<2x16x8xf32> -> vector<2x16x8xf32>
    "tpu.trace_stop"() : () -> ()
    %62 = vector.extract_strided_slice %24 {offsets = [0, 0, 16], sizes = [2, 16, 8], strides = [1, 1, 1]} : vector<2x16x32xf32> to vector<2x16x8xf32>
    %63 = vector.extract_strided_slice %26 {offsets = [0, 0, 16], sizes = [2, 16, 8], strides = [1, 1, 1]} : vector<2x16x32xf32> to vector<2x16x8xf32>
    %64 = vector.extract_strided_slice %31 {offsets = [0, 0, 16], sizes = [2, 16, 8], strides = [1, 1, 1]} : vector<2x16x32xf32> to vector<2x16x8xf32>
    "tpu.trace_start"() <{level = 10 : i32, message = "bqd,bkd->bqk"}> : () -> ()
    %cst_30 = arith.constant dense<0.000000e+00> : vector<2x16x16xf32>
    %65 = tpu.matmul %62, %63, %cst_30 {dimension_numbers = #tpu.dot_dimension_numbers<[2], [2], [1], [1], [0, 0, 0, 1, 1, 1], [0], [0]>} : vector<2x16x8xf32>, vector<2x16x8xf32>, vector<2x16x16xf32> -> vector<2x16x16xf32>
    "tpu.trace_stop"() : () -> ()
    %cst_31 = arith.constant dense<0xFF800000> : vector<2x16xf32>
    %66 = vector.multi_reduction <maximumf>, %65, %cst_31 [2] : vector<2x16x16xf32> to vector<2x16xf32>
    %67 = vector.shape_cast %66 : vector<2x16xf32> to vector<2x16x1xf32>
    %68 = vector.broadcast %67 : vector<2x16x1xf32> to vector<2x16x16xf32>
    %69 = arith.subf %65, %68 : vector<2x16x16xf32>
    %70 = math.exp %69 : vector<2x16x16xf32>
    %cst_32 = arith.constant dense<0.000000e+00> : vector<2x16xf32>
    %71 = vector.multi_reduction <add>, %70, %cst_32 [2] : vector<2x16x16xf32> to vector<2x16xf32>
    %72 = vector.shape_cast %71 : vector<2x16xf32> to vector<2x16x1xf32>
    %73 = tpu.reciprocal %72 : vector<2x16x1xf32> -> vector<2x16x1xf32>
    %74 = vector.broadcast %73 : vector<2x16x1xf32> to vector<2x16x16xf32>
    %75 = arith.mulf %70, %74 : vector<2x16x16xf32>
    "tpu.trace_start"() <{level = 10 : i32, message = "bqk,bkd->bqd"}> : () -> ()
    %cst_33 = arith.constant dense<0.000000e+00> : vector<2x16x8xf32>
    %76 = tpu.matmul %75, %64, %cst_33 {dimension_numbers = #tpu.dot_dimension_numbers<[2], [1], [1], [2], [0, 0, 0, 1, 1, 2], [0], [0]>} : vector<2x16x16xf32>, vector<2x16x8xf32>, vector<2x16x8xf32> -> vector<2x16x8xf32>
    "tpu.trace_stop"() : () -> ()
    %77 = vector.extract_strided_slice %24 {offsets = [0, 0, 24], sizes = [2, 16, 8], strides = [1, 1, 1]} : vector<2x16x32xf32> to vector<2x16x8xf32>
    %78 = vector.extract_strided_slice %26 {offsets = [0, 0, 24], sizes = [2, 16, 8], strides = [1, 1, 1]} : vector<2x16x32xf32> to vector<2x16x8xf32>
    %79 = vector.extract_strided_slice %31 {offsets = [0, 0, 24], sizes = [2, 16, 8], strides = [1, 1, 1]} : vector<2x16x32xf32> to vector<2x16x8xf32>
    "tpu.trace_start"() <{level = 10 : i32, message = "bqd,bkd->bqk"}> : () -> ()
    %cst_34 = arith.constant dense<0.000000e+00> : vector<2x16x16xf32>
    %80 = tpu.matmul %77, %78, %cst_34 {dimension_numbers = #tpu.dot_dimension_numbers<[2], [2], [1], [1], [0, 0, 0, 1, 1, 1], [0], [0]>} : vector<2x16x8xf32>, vector<2x16x8xf32>, vector<2x16x16xf32> -> vector<2x16x16xf32>
    "tpu.trace_stop"() : () -> ()
    %cst_35 = arith.constant dense<0xFF800000> : vector<2x16xf32>
    %81 = vector.multi_reduction <maximumf>, %80, %cst_35 [2] : vector<2x16x16xf32> to vector<2x16xf32>
    %82 = vector.shape_cast %81 : vector<2x16xf32> to vector<2x16x1xf32>
    %83 = vector.broadcast %82 : vector<2x16x1xf32> to vector<2x16x16xf32>
    %84 = arith.subf %80, %83 : vector<2x16x16xf32>
    %85 = math.exp %84 : vector<2x16x16xf32>
    %cst_36 = arith.constant dense<0.000000e+00> : vector<2x16xf32>
    %86 = vector.multi_reduction <add>, %85, %cst_36 [2] : vector<2x16x16xf32> to vector<2x16xf32>
    %87 = vector.shape_cast %86 : vector<2x16xf32> to vector<2x16x1xf32>
    %88 = tpu.reciprocal %87 : vector<2x16x1xf32> -> vector<2x16x1xf32>
    %89 = vector.broadcast %88 : vector<2x16x1xf32> to vector<2x16x16xf32>
    %90 = arith.mulf %85, %89 : vector<2x16x16xf32>
    "tpu.trace_start"() <{level = 10 : i32, message = "bqk,bkd->bqd"}> : () -> ()
    %cst_37 = arith.constant dense<0.000000e+00> : vector<2x16x8xf32>
    %91 = tpu.matmul %90, %79, %cst_37 {dimension_numbers = #tpu.dot_dimension_numbers<[2], [1], [1], [2], [0, 0, 0, 1, 1, 2], [0], [0]>} : vector<2x16x16xf32>, vector<2x16x8xf32>, vector<2x16x8xf32> -> vector<2x16x8xf32>
    "tpu.trace_stop"() : () -> ()
    %92 = tpu.concatenate %46, %61, %76, %91 in 2 : vector<2x16x8xf32>, vector<2x16x8xf32>, vector<2x16x8xf32>, vector<2x16x8xf32> -> vector<2x16x32xf32>
    %93 = vector.shape_cast %92 : vector<2x16x32xf32> to vector<32x32xf32>
    %cst_38 = arith.constant dense<0.000000e+00> : vector<32x32xf32>
    %94 = tpu.matmul %93, %6, %cst_38 {dimension_numbers = #tpu.dot_dimension_numbers<[1], [0], [0], [1], [0, 0, 1, 1], [], []>} : vector<32x32xf32>, vector<32x32xf32>, vector<32x32xf32> -> vector<32x32xf32>
    %95 = vector.broadcast %10 : vector<1x32xf32> to vector<32x32xf32>
    %96 = arith.addf %94, %95 : vector<32x32xf32>
    %97 = arith.addf %2, %96 : vector<32x32xf32>
    %cst_39 = arith.constant dense<0.000000e+00> : vector<32xf32>
    %98 = vector.multi_reduction <add>, %97, %cst_39 [1] : vector<32x32xf32> to vector<32xf32>
    %99 = vector.shape_cast %98 : vector<32xf32> to vector<32x1xf32>
    %cst_40 = arith.constant 3.200000e+01 : f32
    %100 = vector.broadcast %cst_40 : f32 to vector<32x1xf32>
    %101 = arith.divf %99, %100 : vector<32x1xf32>
    %102 = vector.broadcast %101 : vector<32x1xf32> to vector<32x32xf32>
    %103 = arith.subf %97, %102 : vector<32x32xf32>
    %104 = arith.mulf %103, %103 : vector<32x32xf32>
    %cst_41 = arith.constant dense<0.000000e+00> : vector<32xf32>
    %105 = vector.multi_reduction <add>, %104, %cst_41 [1] : vector<32x32xf32> to vector<32xf32>
    %106 = vector.shape_cast %105 : vector<32xf32> to vector<32x1xf32>
    %cst_42 = arith.constant 3.200000e+01 : f32
    %107 = vector.broadcast %cst_42 : f32 to vector<32x1xf32>
    %108 = arith.divf %106, %107 : vector<32x1xf32>
    %109 = vector.broadcast %101 : vector<32x1xf32> to vector<32x32xf32>
    %110 = arith.subf %97, %109 : vector<32x32xf32>
    %cst_43 = arith.constant 9.99999974E-6 : f32
    %111 = vector.broadcast %cst_43 : f32 to vector<32x1xf32>
    %112 = arith.addf %108, %111 : vector<32x1xf32>
    %113 = math.rsqrt %112 : vector<32x1xf32>
    %114 = vector.broadcast %113 : vector<32x1xf32> to vector<32x32xf32>
    %115 = arith.mulf %110, %114 : vector<32x32xf32>
    %116 = vector.broadcast %11 : vector<1x32xf32> to vector<32x32xf32>
    %117 = arith.mulf %115, %116 : vector<32x32xf32>
    %118 = vector.broadcast %12 : vector<1x32xf32> to vector<32x32xf32>
    %119 = arith.addf %117, %118 : vector<32x32xf32>
    %cst_44 = arith.constant dense<0.000000e+00> : vector<32x64xf32>
    %120 = tpu.matmul %119, %7, %cst_44 {dimension_numbers = #tpu.dot_dimension_numbers<[1], [0], [0], [1], [0, 0, 1, 1], [], []>} : vector<32x32xf32>, vector<32x64xf32>, vector<32x64xf32> -> vector<32x64xf32>
    %121 = vector.broadcast %13 : vector<1x64xf32> to vector<32x64xf32>
    %122 = arith.addf %120, %121 : vector<32x64xf32>
    %cst_45 = arith.constant 0.000000e+00 : f32
    %123 = vector.broadcast %cst_45 : f32 to vector<32x64xf32>
    %124 = arith.maximumf %122, %123 : vector<32x64xf32>
    %cst_46 = arith.constant dense<0.000000e+00> : vector<32x32xf32>
    %125 = tpu.matmul %124, %8, %cst_46 {dimension_numbers = #tpu.dot_dimension_numbers<[1], [0], [0], [1], [0, 0, 1, 1], [], []>} : vector<32x64xf32>, vector<64x32xf32>, vector<32x32xf32> -> vector<32x32xf32>
    %126 = vector.broadcast %14 : vector<1x32xf32> to vector<32x32xf32>
    %127 = arith.addf %125, %126 : vector<32x32xf32>
    %128 = arith.addf %119, %127 : vector<32x32xf32>
    %cst_47 = arith.constant dense<0.000000e+00> : vector<32xf32>
    %129 = vector.multi_reduction <add>, %128, %cst_47 [1] : vector<32x32xf32> to vector<32xf32>
    %130 = vector.shape_cast %129 : vector<32xf32> to vector<32x1xf32>
    %cst_48 = arith.constant 3.200000e+01 : f32
    %131 = vector.broadcast %cst_48 : f32 to vector<32x1xf32>
    %132 = arith.divf %130, %131 : vector<32x1xf32>
    %133 = vector.broadcast %132 : vector<32x1xf32> to vector<32x32xf32>
    %134 = arith.subf %128, %133 : vector<32x32xf32>
    %135 = arith.mulf %134, %134 : vector<32x32xf32>
    %cst_49 = arith.constant dense<0.000000e+00> : vector<32xf32>
    %136 = vector.multi_reduction <add>, %135, %cst_49 [1] : vector<32x32xf32> to vector<32xf32>
    %137 = vector.shape_cast %136 : vector<32xf32> to vector<32x1xf32>
    %cst_50 = arith.constant 3.200000e+01 : f32
    %138 = vector.broadcast %cst_50 : f32 to vector<32x1xf32>
    %139 = arith.divf %137, %138 : vector<32x1xf32>
    %140 = vector.broadcast %132 : vector<32x1xf32> to vector<32x32xf32>
    %141 = arith.subf %128, %140 : vector<32x32xf32>
    %cst_51 = arith.constant 9.99999974E-6 : f32
    %142 = vector.broadcast %cst_51 : f32 to vector<32x1xf32>
    %143 = arith.addf %139, %142 : vector<32x1xf32>
    %144 = math.rsqrt %143 : vector<32x1xf32>
    %145 = vector.broadcast %144 : vector<32x1xf32> to vector<32x32xf32>
    %146 = arith.mulf %141, %145 : vector<32x32xf32>
    %147 = vector.broadcast %15 : vector<1x32xf32> to vector<32x32xf32>
    %148 = arith.mulf %146, %147 : vector<32x32xf32>
    %149 = vector.broadcast %16 : vector<1x32xf32> to vector<32x32xf32>
    %150 = arith.addf %148, %149 : vector<32x32xf32>
    %151 = vector.shape_cast %150 : vector<32x32xf32> to vector<2x16x32xf32>
    %c0_52 = arith.constant 0 : index
    %c0_53 = arith.constant 0 : index
    %c0_54 = arith.constant 0 : index
    %152 = vector.load %arg5[%c0_52, %c0_53, %c0_54] : memref<2x16x32xf32, #tpu.memory_space<vmem>>, vector<2x16x32xf32>
    tpu.vector_store %arg5[%c0_52, %c0_53, %c0_54], %151 {strides = array<i32>} : memref<2x16x32xf32, #tpu.memory_space<vmem>>, vector<2x16x32xf32>,
    return
  }
  func.func @transform_0(%arg0: i32) -> (i32, i32, i32) {
    %c0_i32 = arith.constant 0 : i32
    %c0_i32_0 = arith.constant 0 : i32
    %c0_i32_1 = arith.constant 0 : i32
    %c0_i32_2 = arith.constant 0 : i32
    return %c0_i32, %c0_i32_0, %c0_i32_1 : i32, i32, i32
  }
  func.func @transform_1(%arg0: i32) -> (i32, i32, i32) {
    %c0_i32 = arith.constant 0 : i32
    %c0_i32_0 = arith.constant 0 : i32
    %c0_i32_1 = arith.constant 0 : i32
    %c0_i32_2 = arith.constant 0 : i32
    return %c0_i32, %c0_i32_0, %c0_i32_1 : i32, i32, i32
  }
  func.func @transform_2(%arg0: i32) -> (i32, i32) {
    %c0_i32 = arith.constant 0 : i32
    %c0_i32_0 = arith.constant 0 : i32
    %c0_i32_1 = arith.constant 0 : i32
    return %c0_i32, %c0_i32_0 : i32, i32
  }
  func.func @transform_3(%arg0: i32) -> (i32, i32) {
    %c0_i32 = arith.constant 0 : i32
    %c0_i32_0 = arith.constant 0 : i32
    %c0_i32_1 = arith.constant 0 : i32
    return %c0_i32, %c0_i32_0 : i32, i32
  }
  func.func @transform_4(%arg0: i32) -> (i32, i32, i32) {
    %c0_i32 = arith.constant 0 : i32
    %c0_i32_0 = arith.constant 0 : i32
    %c0_i32_1 = arith.constant 0 : i32
    %c0_i32_2 = arith.constant 0 : i32
    return %c0_i32, %c0_i32_0, %c0_i32_1 : i32, i32, i32
  }
}

</mosaic_0001>

<llo_original>
// kernel: tpu_custom_call.1
$region0: #{tpu_custom_call.1}
  #allocation0 [shape = 'u32[]', space=smem, size = 0x4, offset = 0x4, fixed_abs, tag = 'smem constant byte address 0x4 - core index']
  #allocation1 [shape = 'u32[144,128]{1,0:T(1,128)}', space=vmem, size = 0x12000, scoped, tag = 'internal scratch']
  %s0 = inlined_call_operand.hbm [shape: f32[2,16,32], index: 0, kind: input, shape index: {}]
  %s1 = inlined_call_operand.hbm [shape: f32[2,16,32], index: 1, kind: input, shape index: {}]
  %s2 = inlined_call_operand.hbm [shape: f32[64,512], index: 2, kind: input, shape index: {}]
  %s3 = inlined_call_operand.hbm [shape: f32[1,1024], index: 3, kind: input, shape index: {}]
  %s4 = inlined_call_operand.hbm [shape: f32[2,16,32], index: 4, kind: output, shape index: {}]
  %s5 = sld [smem:[#allocation0]]
  $region42: #{tpu_custom_call.1} parent=0
    _
  %s7 = ssub.s32 1, %s5
  %s8 = scalar_select 0, %s7, %s5
  $region1: #{tpu_custom_call.1} parent=0
    #allocation2 [shape = 'u8[16384]{0}', space=vmem, size = 0x4000, scoped, tag = 'input window, operand 0, single buffered']
    #allocation3 [shape = 's32[1]{0}', space=sflag, size = 0x4, scoped, tag = 'scoped memory for tpu_custom_call.1']
    #allocation4 [shape = 's32[1]{0}', space=sflag, size = 0x4, scoped, tag = 'scoped memory for tpu_custom_call.1']
    #allocation5 [shape = 'u8[16384]{0}', space=vmem, size = 0x4000, scoped, tag = 'input window, operand 1, single buffered']
    #allocation6 [shape = 's32[1]{0}', space=sflag, size = 0x4, scoped, tag = 'scoped memory for tpu_custom_call.1']
    #allocation7 [shape = 'u8[131072]{0}', space=vmem, size = 0x20000, scoped, tag = 'input window, operand 2, single buffered']
    #allocation8 [shape = 'u8[4096]{0}', space=vmem, size = 0x1000, scoped, tag = 'input window, operand 3, single buffered']
    #allocation9 [shape = 's32[1]{0}', space=sflag, size = 0x4, scoped, tag = 'scoped memory for tpu_custom_call.1']
    #allocation10 [shape = 'u8[16384]{0}', space=vmem, size = 0x4000, scoped, tag = 'output window, operand 0, single buffered']
    %9 = vsyncpa [#allocation3], 0
    %10 = vsyncpa [#allocation6], 0
    %11 = vsyncpa [#allocation9], 0
    %12 = vsyncpa [#allocation4], 0
    // Predicated region
    $region2: #{tpu_custom_call.1} parent=1 // pred_check
      _
    $region3: #{tpu_custom_call.1} parent=1 // pred_check_branch
      %14 = sbr.rel (0) target = $region5
    $region4: #{tpu_custom_call.1} parent=1 // pred_region
      %s16 = ssub.s32 512, 512
      %17 = vsyncadd [#allocation3], %s16
      %s18 = sshll.u32 [#allocation2], 4
      %s19 = int_to_ptr.vmem [resolvable:$true] %s18
      %24 = dma.hbm_to_vmem [thread:$0]  %s0, 512, %s19, [#allocation3], 128, 128, 8
    $region5: #{tpu_custom_call.1} parent=1 // pred_fallthru
      _
    // Predicated region
    $region6: #{tpu_custom_call.1} parent=1 // pred_check
      _
    $region7: #{tpu_custom_call.1} parent=1 // pred_check_branch
      %26 = sbr.rel (0) target = $region9
    $region8: #{tpu_custom_call.1} parent=1 // pred_region
      %s28 = ssub.s32 512, 512
      %29 = vsyncadd [#allocation6], %s28
      %s30 = sshll.u32 [#allocation5], 4
      %s31 = int_to_ptr.vmem [resolvable:$true] %s30
      %36 = dma.hbm_to_vmem [thread:$0]  %s1, 512, %s31, [#allocation6], 128, 128, 8
    $region9: #{tpu_custom_call.1} parent=1 // pred_fallthru
      _
    // Predicated region
    $region10: #{tpu_custom_call.1} parent=1 // pred_check
      _
    $region11: #{tpu_custom_call.1} parent=1 // pred_check_branch
      %38 = sbr.rel (0) target = $region13
    $region12: #{tpu_custom_call.1} parent=1 // pred_region
      %s40 = ssub.s32 4096, 4096
      %41 = vsyncadd [#allocation6], %s40
      %s42 = sshll.u32 [#allocation7], 4
      %s43 = int_to_ptr.vmem [resolvable:$true] %s42
      %48 = dma.hbm_to_vmem [thread:$0]  %s2, 4096, %s43, [#allocation6], 512, 512, 32
    $region13: #{tpu_custom_call.1} parent=1 // pred_fallthru
      _
    // Predicated region
    $region14: #{tpu_custom_call.1} parent=1 // pred_check
      _
    $region15: #{tpu_custom_call.1} parent=1 // pred_check_branch
      %50 = sbr.rel (0) target = $region17
    $region16: #{tpu_custom_call.1} parent=1 // pred_region
      %s52 = ssub.s32 128, 128
      %53 = vsyncadd [#allocation9], %s52
      %s55 = sshll.u32 [#allocation8], 4
      %s56 = int_to_ptr.vmem [resolvable:$true] %s55
      %58 = dma.hbm_to_vmem [thread:$0]  %s3, 128, %s56, [#allocation9]
    $region17: #{tpu_custom_call.1} parent=1 // pred_fallthru
      _
    // Predicated region
    $region18: #{tpu_custom_call.1} parent=1 // pred_check
      _
    $region19: #{tpu_custom_call.1} parent=1 // pred_check_branch
      %60 = sbr.rel (0) target = $region21
    $region20: #{tpu_custom_call.1} parent=1 // pred_region
      %61 = dma.done [#allocation3], 512
    $region21: #{tpu_custom_call.1} parent=1 // pred_fallthru
      _
    // Predicated region
    $region22: #{tpu_custom_call.1} parent=1 // pred_check
      _
    $region23: #{tpu_custom_call.1} parent=1 // pred_check_branch
      %63 = sbr.rel (0) target = $region25
    $region24: #{tpu_custom_call.1} parent=1 // pred_region
      %64 = dma.done [#allocation6], 512
    $region25: #{tpu_custom_call.1} parent=1 // pred_fallthru
      _
    // Predicated region
    $region26: #{tpu_custom_call.1} parent=1 // pred_check
      _
    $region27: #{tpu_custom_call.1} parent=1 // pred_check_branch
      %66 = sbr.rel (0) target = $region29
    $region28: #{tpu_custom_call.1} parent=1 // pred_region
      %67 = dma.done [#allocation6], 4096
    $region29: #{tpu_custom_call.1} parent=1 // pred_fallthru
      _
    // Predicated region
    $region30: #{tpu_custom_call.1} parent=1 // pred_check
      _
    $region31: #{tpu_custom_call.1} parent=1 // pred_check_branch
      %69 = sbr.rel (0) target = $region33
    $region32: #{tpu_custom_call.1} parent=1 // pred_region
      %70 = dma.done [#allocation9], 128
    $region33: #{tpu_custom_call.1} parent=1 // pred_fallthru
      _
    %v71 = vld [vmem:[#allocation2] sm:$0xff]
    %v72 = vld [vmem:[#allocation2 + $0x8] sm:$0xff]
    %v73 = vld [vmem:[#allocation2 + $0x10] sm:$0xff]
    %v74 = vld [vmem:[#allocation2 + $0x18] sm:$0xff]
    %v75 = vld [vmem:[#allocation5] sm:$0xff]
    %v76 = vld [vmem:[#allocation5 + $0x8] sm:$0xff]
    %v77 = vld [vmem:[#allocation5 + $0x10] sm:$0xff]
    %v78 = vld [vmem:[#allocation5 + $0x18] sm:$0xff]
    %v79 = vadd.f32 %v71, %v75
    %v80 = vadd.f32 %v72, %v76
    %v81 = vadd.f32 %v73, %v77
    %v82 = vadd.f32 %v74, %v78
    %v83 = vld [vmem:[#allocation7] sm:$0xff]
    %v84 = vld [vmem:[#allocation7 + $0x20] sm:$0xff]
    %v85 = vld [vmem:[#allocation7 + $0x40] sm:$0xff]
    %v86 = vld [vmem:[#allocation7 + $0x60] sm:$0xff]
    %v87 = vld [vmem:[#allocation7 + $0x8] sm:$0xff]
    %v88 = vld [vmem:[#allocation7 + $0x28] sm:$0xff]
    %v89 = vld [vmem:[#allocation7 + $0x48] sm:$0xff]
    %v90 = vld [vmem:[#allocation7 + $0x68] sm:$0xff]
    %v91 = vld [vmem:[#allocation7 + $0x10] sm:$0xff]
    %v92 = vld [vmem:[#allocation7 + $0x30] sm:$0xff]
    %v93 = vld [vmem:[#allocation7 + $0x50] sm:$0xff]
    %v94 = vld [vmem:[#allocation7 + $0x70] sm:$0xff]
    %v95 = vld [vmem:[#allocation7 + $0x18] sm:$0xff]
    %v96 = vld [vmem:[#allocation7 + $0x38] sm:$0xff]
    %v97 = vld [vmem:[#allocation7 + $0x58] sm:$0xff]
    %v98 = vld [vmem:[#allocation7 + $0x78] sm:$0xff]
    %v99 = vld [vmem:[#allocation7 + $0x98] sm:$0xff]
    %v100 = vld [vmem:[#allocation7 + $0xb8] sm:$0xff]
    %v101 = vld [vmem:[#allocation7 + $0xd8] sm:$0xff]
    %v102 = vld [vmem:[#allocation7 + $0xf8] sm:$0xff]
    %v103 = vld [vmem:[#allocation8] sm:$0x1]
    %v104 = vld [vmem:[#allocation8 + $0x1] sm:$0x1]
    %v105 = vld [vmem:[#allocation8 + $0x2] sm:$0x1]
    %v106 = vld [vmem:[#allocation8 + $0x3] sm:$0x1]
    %v107 = vld [vmem:[#allocation8 + $0x4] sm:$0x1]
    %v108 = vld [vmem:[#allocation8 + $0x5] sm:$0x1]
    %v109 = vld [vmem:[#allocation8 + $0x6] sm:$0x1]
    %v110 = vld [vmem:[#allocation8 + $0x7] sm:$0x1]
    %vm111 = vcmask 261120
    %v113 = vsel %vm111, %v79, 0
    %v116 = vsel %vm111, %v80, 0
    %v119 = vsel %vm111, %v81, 0
    %v122 = vsel %vm111, %v82, 0
    %v125 = vsel %vm111, %v71, 0
    %v128 = vsel %vm111, %v72, 0
    %v131 = vsel %vm111, %v73, 0
    %v134 = vsel %vm111, %v74, 0
    %136 = vmatprep.subr.mxu0 0.0
    %137 = vmatpush1.msra.mxu0 0.0
    %138 = vmatprep.subr.mxu0 0.0
    %139 = vmatpush1.msra.mxu0 0.0
    %140 = vmatprep.subr.mxu0 0.0
    %141 = vmatpush1.msra.mxu0 0.0
    %142 = vmatprep.subr.mxu0 0.0
    %143 = vmatpush1.msra.mxu0 0.0
    %144 = vmatprep.subr.mxu0 0.0
    %145 = vmatpush1.msra.mxu0 0.0
    %146 = vmatprep.subr.mxu0 0.0
    %147 = vmatpush1.msra.mxu0 0.0
    %148 = vmatprep.subr.mxu0 0.0
    %149 = vmatpush1.msra.mxu0 0.0
    %150 = vmatprep.subr.mxu0 0.0
    %151 = vmatpush1.msra.mxu0 0.0
    %152 = vmatprep.subr.mxu0 0.0
    %153 = vmatpush1.msra.mxu0 0.0
    %154 = vmatprep.subr.mxu0 0.0
    %155 = vmatpush1.msra.mxu0 0.0
    %156 = vmatprep.subr.mxu0 0.0
    %157 = vmatpush1.msra.mxu0 0.0
    %158 = vmatprep.subr.mxu0 0.0
    %159 = vmatpush1.msra.mxu0 0.0
    %160 = vmatprep.subr.mxu0 0.0
    %161 = vmatpush1.msra.mxu0 %v86
    %162 = vmatprep.subr.mxu0 0.0
    %163 = vmatpush1.msra.mxu0 %v85
    %164 = vmatprep.subr.mxu0 0.0
    %165 = vmatpush1.msra.mxu0 %v84
    %166 = vmatprep.subr.mxu0 0.0
    %167 = vmatpush1.msra.mxu0 %v83
    %168 = vmatprep.subr.mxu0 0.0
    %169 = vmatpush2.msra.mxu0 0.0
    %170 = vmatprep.subr.mxu0 0.0
    %171 = vmatpush2.msra.mxu0 0.0
    %172 = vmatprep.subr.mxu0 0.0
    %173 = vmatpush2.msra.mxu0 0.0
    %174 = vmatprep.subr.mxu0 0.0
    %175 = vmatpush2.msra.mxu0 0.0
    %176 = vmatprep.subr.mxu0 0.0
    %177 = vmatpush2.msra.mxu0 0.0
    %178 = vmatprep.subr.mxu0 0.0
    %179 = vmatpush2.msra.mxu0 0.0
    %180 = vmatprep.subr.mxu0 0.0
    %181 = vmatpush2.msra.mxu0 0.0
    %182 = vmatprep.subr.mxu0 0.0
    %183 = vmatpush2.msra.mxu0 0.0
    %184 = vmatprep.subr.mxu0 0.0
    %185 = vmatpush2.msra.mxu0 0.0
    %186 = vmatprep.subr.mxu0 0.0
    %187 = vmatpush2.msra.mxu0 0.0
    %188 = vmatprep.subr.mxu0 0.0
    %189 = vmatpush2.msra.mxu0 0.0
    %190 = vmatprep.subr.mxu0 0.0
    %191 = vmatpush2.msra.mxu0 0.0
    %192 = vmatprep.subr.mxu0 0.0
    %193 = vmatpush2.msra.mxu0 0.0
    %194 = vmatprep.subr.mxu0 0.0
    %195 = vmatpush2.msra.mxu0 0.0
    %196 = vmatprep.subr.mxu0 0.0
    %197 = vmatpush2.msra.mxu0 0.0
    %198 = vmatprep.subr.mxu0 0.0
    %199 = vmatpush2.msra.mxu0 0.0
    %200 = vmatprep.mubr.f32.mxu0 0.0
    %201 = vmatmul.mubr.f32.gmra.mxu0 %v113
    %v202 = vpop.f32.mrf.mxu0
    %v203 = vadd.f32 0.0, %v202
    %v204 = vpop.f32.mrf.mxu0
    %205 = vmatprep.mubr.f32.mxu0 0.0
    %206 = vmatmul.mubr.f32.gmra.mxu0 %v116
    %v207 = vpop.f32.mrf.mxu0
    %v208 = vadd.f32 0.0, %v207
    %v209 = vpop.f32.mrf.mxu0
    %210 = vmatprep.mubr.f32.mxu0 0.0
    %211 = vmatmul.mubr.f32.gmra.mxu0 %v119
    %v212 = vpop.f32.mrf.mxu0
    %v213 = vadd.f32 0.0, %v212
    %v214 = vpop.f32.mrf.mxu0
    %215 = vmatprep.mubr.f32.mxu0 0.0
    %216 = vmatmul.mubr.f32.gmra.mxu0 %v122
    %v217 = vpop.f32.mrf.mxu0
    %v218 = vadd.f32 0.0, %v217
    %v219 = vpop.f32.mrf.mxu0
    %220 = vmatprep.mubr.f32.mxu0 0.0
    %221 = vmatmul.mubr.f32.gmra.mxu0 %v125
    %v222 = vpop.f32.mrf.mxu0
    %v223 = vadd.f32 0.0, %v222
    %v224 = vpop.f32.mrf.mxu0
    %225 = vmatprep.mubr.f32.mxu0 0.0
    %226 = vmatmul.mubr.f32.gmra.mxu0 %v128
    %v227 = vpop.f32.mrf.mxu0
    %v228 = vadd.f32 0.0, %v227
    %v229 = vpop.f32.mrf.mxu0
    %230 = vmatprep.mubr.f32.mxu0 0.0
    %231 = vmatmul.mubr.f32.gmra.mxu0 %v131
    %v232 = vpop.f32.mrf.mxu0
    %v233 = vadd.f32 0.0, %v232
    %v234 = vpop.f32.mrf.mxu0
    %235 = vmatprep.mubr.f32.mxu0 0.0
    %236 = vmatmul.mubr.f32.gmra.mxu0 %v134
    %v237 = vpop.f32.mrf.mxu0
    %v238 = vadd.f32 0.0, %v237
    %v239 = vpop.f32.mrf.mxu0
    %240 = vdwg.mxu0
    %v242 = vlaneseq
    %v243 = vshrl.u32 %v242, 7
    %v244 = vsub.s32 0, %v243
    %v245 = vrot.slane %v103, %v244
    %v247 = vadd.f32 %v203, %v245
    %v248 = vadd.f32 %v208, %v245
    %v249 = vadd.f32 %v213, %v245
    %v250 = vadd.f32 %v218, %v245
    %v251 = vadd.f32 %v223, %v245
    %v252 = vadd.f32 %v228, %v245
    %v253 = vadd.f32 %v233, %v245
    %v254 = vadd.f32 %v238, %v245
    %257 = vrot.lane.b32.xlu0 %v247, 96
    %v258 = vpop.permute.xlu0 %257
    %259 = vrot.lane.b32.xlu0 %v248, 96
    %v260 = vpop.permute.xlu0 %259
    %vm261 = vcmask 64512
    %v262 = vsel %vm261, %v247, 0
    %v264 = vsel %vm261, %v248, 0
    %v266 = vsel %vm261, %v258, 0
    %v268 = vsel %vm261, %v260, 0
    %270 = vmatprep.subr.mxu0 0.0
    %271 = vmatpush1.xpose.msra.mxu0 0.0
    %272 = vmatprep.subr.mxu0 0.0
    %273 = vmatpush1.xpose.msra.mxu0 0.0
    %274 = vmatprep.subr.mxu0 0.0
    %275 = vmatpush1.xpose.msra.mxu0 0.0
    %276 = vmatprep.subr.mxu0 0.0
    %277 = vmatpush1.xpose.msra.mxu0 0.0
    %278 = vmatprep.subr.mxu0 0.0
    %279 = vmatpush1.xpose.msra.mxu0 0.0
    %280 = vmatprep.subr.mxu0 0.0
    %281 = vmatpush1.xpose.msra.mxu0 0.0
    %282 = vmatprep.subr.mxu0 0.0
    %283 = vmatpush1.xpose.msra.mxu0 0.0
    %284 = vmatprep.subr.mxu0 0.0
    %285 = vmatpush1.xpose.msra.mxu0 0.0
    %286 = vmatprep.subr.mxu0 0.0
    %287 = vmatpush1.xpose.msra.mxu0 0.0
    %288 = vmatprep.subr.mxu0 0.0
    %289 = vmatpush1.xpose.msra.mxu0 0.0
    %290 = vmatprep.subr.mxu0 0.0
    %291 = vmatpush1.xpose.msra.mxu0 0.0
    %292 = vmatprep.subr.mxu0 0.0
    %293 = vmatpush1.xpose.msra.mxu0 0.0
    %294 = vmatprep.subr.mxu0 0.0
    %295 = vmatpush1.xpose.msra.mxu0 0.0
    %296 = vmatprep.subr.mxu0 0.0
    %297 = vmatpush1.xpose.msra.mxu0 0.0
    %298 = vmatprep.subr.mxu0 0.0
    %299 = vmatpush1.xpose.msra.mxu0 %v268
    %300 = vmatprep.subr.mxu0 0.0
    %301 = vmatpush1.xpose.msra.mxu0 %v266
    %302 = vmatprep.subr.mxu0 0.0
    %303 = vmatpush2.xpose.msra.mxu0 0.0
    %304 = vmatprep.subr.mxu0 0.0
    %305 = vmatpush2.xpose.msra.mxu0 0.0
    %306 = vmatprep.subr.mxu0 0.0
    %307 = vmatpush2.xpose.msra.mxu0 0.0
    %308 = vmatprep.subr.mxu0 0.0
    %309 = vmatpush2.xpose.msra.mxu0 0.0
    %310 = vmatprep.subr.mxu0 0.0
    %311 = vmatpush2.xpose.msra.mxu0 0.0
    %312 = vmatprep.subr.mxu0 0.0
    %313 = vmatpush2.xpose.msra.mxu0 0.0
    %314 = vmatprep.subr.mxu0 0.0
    %315 = vmatpush2.xpose.msra.mxu0 0.0
    %316 = vmatprep.subr.mxu0 0.0
    %317 = vmatpush2.xpose.msra.mxu0 0.0
    %318 = vmatprep.subr.mxu0 0.0
    %319 = vmatpush2.xpose.msra.mxu0 0.0
    %320 = vmatprep.subr.mxu0 0.0
    %321 = vmatpush2.xpose.msra.mxu0 0.0
    %322 = vmatprep.subr.mxu0 0.0
    %323 = vmatpush2.xpose.msra.mxu0 0.0
    %324 = vmatprep.subr.mxu0 0.0
    %325 = vmatpush2.xpose.msra.mxu0 0.0
    %326 = vmatprep.subr.mxu0 0.0
    %327 = vmatpush2.xpose.msra.mxu0 0.0
    %328 = vmatprep.subr.mxu0 0.0
    %329 = vmatpush2.xpose.msra.mxu0 0.0
    %330 = vmatprep.subr.mxu0 0.0
    %331 = vmatpush2.xpose.msra.mxu0 0.0
    %332 = vmatprep.subr.mxu0 0.0
    %333 = vmatpush2.xpose.msra.mxu0 0.0
    %334 = vmatprep.mubr.f32.mxu0 0.0
    %335 = vmatmul.mubr.f32.gmra.mxu0 %v262
    %v336 = vpop.f32.mrf.mxu0
    %v337 = vadd.f32 0.0, %v336
    %v338 = vpop.f32.mrf.mxu0
    %339 = vmatprep.mubr.f32.mxu0 0.0
    %340 = vmatmul.mubr.f32.gmra.mxu0 %v264
    %v341 = vpop.f32.mrf.mxu0
    %v342 = vadd.f32 0.0, %v341
    %v343 = vpop.f32.mrf.mxu0
    %344 = vdwg.mxu0
    %347 = vrot.lane.b32.xlu0 %v249, 96
    %v348 = vpop.permute.xlu0 %347
    %349 = vrot.lane.b32.xlu0 %v250, 96
    %v350 = vpop.permute.xlu0 %349
    %v351 = vsel %vm261, %v249, 0
    %v353 = vsel %vm261, %v250, 0
    %v355 = vsel %vm261, %v348, 0
    %v357 = vsel %vm261, %v350, 0
    %359 = vmatprep.subr.mxu0 0.0
    %360 = vmatpush1.xpose.msra.mxu0 0.0
    %361 = vmatprep.subr.mxu0 0.0
    %362 = vmatpush1.xpose.msra.mxu0 0.0
    %363 = vmatprep.subr.mxu0 0.0
    %364 = vmatpush1.xpose.msra.mxu0 0.0
    %365 = vmatprep.subr.mxu0 0.0
    %366 = vmatpush1.xpose.msra.mxu0 0.0
    %367 = vmatprep.subr.mxu0 0.0
    %368 = vmatpush1.xpose.msra.mxu0 0.0
    %369 = vmatprep.subr.mxu0 0.0
    %370 = vmatpush1.xpose.msra.mxu0 0.0
    %371 = vmatprep.subr.mxu0 0.0
    %372 = vmatpush1.xpose.msra.mxu0 0.0
    %373 = vmatprep.subr.mxu0 0.0
    %374 = vmatpush1.xpose.msra.mxu0 0.0
    %375 = vmatprep.subr.mxu0 0.0
    %376 = vmatpush1.xpose.msra.mxu0 0.0
    %377 = vmatprep.subr.mxu0 0.0
    %378 = vmatpush1.xpose.msra.mxu0 0.0
    %379 = vmatprep.subr.mxu0 0.0
    %380 = vmatpush1.xpose.msra.mxu0 0.0
    %381 = vmatprep.subr.mxu0 0.0
    %382 = vmatpush1.xpose.msra.mxu0 0.0
    %383 = vmatprep.subr.mxu0 0.0
    %384 = vmatpush1.xpose.msra.mxu0 0.0
    %385 = vmatprep.subr.mxu0 0.0
    %386 = vmatpush1.xpose.msra.mxu0 0.0
    %387 = vmatprep.subr.mxu0 0.0
    %388 = vmatpush1.xpose.msra.mxu0 %v357
    %389 = vmatprep.subr.mxu0 0.0
    %390 = vmatpush1.xpose.msra.mxu0 %v355
    %391 = vmatprep.subr.mxu0 0.0
    %392 = vmatpush2.xpose.msra.mxu0 0.0
    %393 = vmatprep.subr.mxu0 0.0
    %394 = vmatpush2.xpose.msra.mxu0 0.0
    %395 = vmatprep.subr.mxu0 0.0
    %396 = vmatpush2.xpose.msra.mxu0 0.0
    %397 = vmatprep.subr.mxu0 0.0
    %398 = vmatpush2.xpose.msra.mxu0 0.0
    %399 = vmatprep.subr.mxu0 0.0
    %400 = vmatpush2.xpose.msra.mxu0 0.0
    %401 = vmatprep.subr.mxu0 0.0
    %402 = vmatpush2.xpose.msra.mxu0 0.0
    %403 = vmatprep.subr.mxu0 0.0
    %404 = vmatpush2.xpose.msra.mxu0 0.0
    %405 = vmatprep.subr.mxu0 0.0
    %406 = vmatpush2.xpose.msra.mxu0 0.0
    %407 = vmatprep.subr.mxu0 0.0
    %408 = vmatpush2.xpose.msra.mxu0 0.0
    %409 = vmatprep.subr.mxu0 0.0
    %410 = vmatpush2.xpose.msra.mxu0 0.0
    %411 = vmatprep.subr.mxu0 0.0
    %412 = vmatpush2.xpose.msra.mxu0 0.0
    %413 = vmatprep.subr.mxu0 0.0
    %414 = vmatpush2.xpose.msra.mxu0 0.0
    %415 = vmatprep.subr.mxu0 0.0
    %416 = vmatpush2.xpose.msra.mxu0 0.0
    %417 = vmatprep.subr.mxu0 0.0
    %418 = vmatpush2.xpose.msra.mxu0 0.0
    %419 = vmatprep.subr.mxu0 0.0
    %420 = vmatpush2.xpose.msra.mxu0 0.0
    %421 = vmatprep.subr.mxu0 0.0
    %422 = vmatpush2.xpose.msra.mxu0 0.0
    %423 = vmatprep.mubr.f32.mxu0 0.0
    %424 = vmatmul.mubr.f32.gmra.mxu0 %v351
    %v425 = vpop.f32.mrf.mxu0
    %v426 = vadd.f32 0.0, %v425
    %v427 = vpop.f32.mrf.mxu0
    %428 = vmatprep.mubr.f32.mxu0 0.0
    %429 = vmatmul.mubr.f32.gmra.mxu0 %v353
    %v430 = vpop.f32.mrf.mxu0
    %v431 = vadd.f32 0.0, %v430
    %v432 = vpop.f32.mrf.mxu0
    %433 = vdwg.mxu0
    %vm434 = vcmask 130048
    %v435 = vsel %vm434, %v337, -inf
    %436 = vmax.xlane.f32.xlu0 %v435
    %v437 = vpop.xlane.xlu0 %436
    %v438 = vsel %vm434, %v342, -inf
    %439 = vmax.xlane.f32.xlu0 %v438
    %v440 = vpop.xlane.xlu0 %439
    %v441 = vsel %vm434, %v426, -inf
    %442 = vmax.xlane.f32.xlu0 %v441
    %v443 = vpop.xlane.xlu0 %442
    %v444 = vsel %vm434, %v431, -inf
    %445 = vmax.xlane.f32.xlu0 %v444
    %v446 = vpop.xlane.xlu0 %445
    %v447 = vsub.f32 %v337, %v437
    %v448 = vsub.f32 %v342, %v440
    %v449 = vsub.f32 %v426, %v443
    %v450 = vsub.f32 %v431, %v446
    %v451 = vmul.f32 %v447, 1.442695
    %v452 = vpow.pop %v451
    %v453 = vmul.f32 %v448, 1.442695
    %v454 = vpow.pop %v453
    %v455 = vmul.f32 %v449, 1.442695
    %v456 = vpow.pop %v455
    %v457 = vmul.f32 %v450, 1.442695
    %v458 = vpow.pop %v457
    %v459 = vsel %vm434, %v452, 0.0
    %460 = vadd.xlane.f32.xlu0 %v459
    %v461 = vpop.xlane.xlu0 %460
    %v462 = vsel %vm434, %v454, 0.0
    %463 = vadd.xlane.f32.xlu0 %v462
    %v464 = vpop.xlane.xlu0 %463
    %v465 = vsel %vm434, %v456, 0.0
    %466 = vadd.xlane.f32.xlu0 %v465
    %v467 = vpop.xlane.xlu0 %466
    %v468 = vsel %vm434, %v458, 0.0
    %469 = vadd.xlane.f32.xlu0 %v468
    %v470 = vpop.xlane.xlu0 %469
    %v471 = vrcp.pop %v461
    %v472 = vrcp.pop %v464
    %v473 = vrcp.pop %v467
    %v474 = vrcp.pop %v470
    %v475 = vmul.f32 %v452, %v471
    %v476 = vmul.f32 %v454, %v472
    %v477 = vmul.f32 %v456, %v473
    %v478 = vmul.f32 %v458, %v474
    %481 = vrot.lane.b32.xlu0 %v251, 64
    %v482 = vpop.permute.xlu0 %481
    %483 = vrot.lane.b32.xlu0 %v252, 64
    %v484 = vpop.permute.xlu0 %483
    %v488 = vsel %vm434, %v475, 0
    %v491 = vsel %vm434, %v476, 0
    %493 = vmatprep.subr.mxu0 0.0
    %494 = vmatpush1.msra.mxu0 0.0
    %495 = vmatprep.subr.mxu0 0.0
    %496 = vmatpush1.msra.mxu0 0.0
    %497 = vmatprep.subr.mxu0 0.0
    %498 = vmatpush1.msra.mxu0 0.0
    %499 = vmatprep.subr.mxu0 0.0
    %500 = vmatpush1.msra.mxu0 0.0
    %501 = vmatprep.subr.mxu0 0.0
    %502 = vmatpush1.msra.mxu0 0.0
    %503 = vmatprep.subr.mxu0 0.0
    %504 = vmatpush1.msra.mxu0 0.0
    %505 = vmatprep.subr.mxu0 0.0
    %506 = vmatpush1.msra.mxu0 0.0
    %507 = vmatprep.subr.mxu0 0.0
    %508 = vmatpush1.msra.mxu0 0.0
    %509 = vmatprep.subr.mxu0 0.0
    %510 = vmatpush1.msra.mxu0 0.0
    %511 = vmatprep.subr.mxu0 0.0
    %512 = vmatpush1.msra.mxu0 0.0
    %513 = vmatprep.subr.mxu0 0.0
    %514 = vmatpush1.msra.mxu0 0.0
    %515 = vmatprep.subr.mxu0 0.0
    %516 = vmatpush1.msra.mxu0 0.0
    %517 = vmatprep.subr.mxu0 0.0
    %518 = vmatpush1.msra.mxu0 0.0
    %519 = vmatprep.subr.mxu0 0.0
    %520 = vmatpush1.msra.mxu0 0.0
    %521 = vmatprep.subr.mxu0 0.0
    %522 = vmatpush1.msra.mxu0 %v484
    %523 = vmatprep.subr.mxu0 0.0
    %524 = vmatpush1.msra.mxu0 %v482
    %525 = vmatprep.subr.mxu0 0.0
    %526 = vmatpush2.msra.mxu0 0.0
    %527 = vmatprep.subr.mxu0 0.0
    %528 = vmatpush2.msra.mxu0 0.0
    %529 = vmatprep.subr.mxu0 0.0
    %530 = vmatpush2.msra.mxu0 0.0
    %531 = vmatprep.subr.mxu0 0.0
    %532 = vmatpush2.msra.mxu0 0.0
    %533 = vmatprep.subr.mxu0 0.0
    %534 = vmatpush2.msra.mxu0 0.0
    %535 = vmatprep.subr.mxu0 0.0
    %536 = vmatpush2.msra.mxu0 0.0
    %537 = vmatprep.subr.mxu0 0.0
    %538 = vmatpush2.msra.mxu0 0.0
    %539 = vmatprep.subr.mxu0 0.0
    %540 = vmatpush2.msra.mxu0 0.0
    %541 = vmatprep.subr.mxu0 0.0
    %542 = vmatpush2.msra.mxu0 0.0
    %543 = vmatprep.subr.mxu0 0.0
    %544 = vmatpush2.msra.mxu0 0.0
    %545 = vmatprep.subr.mxu0 0.0
    %546 = vmatpush2.msra.mxu0 0.0
    %547 = vmatprep.subr.mxu0 0.0
    %548 = vmatpush2.msra.mxu0 0.0
    %549 = vmatprep.subr.mxu0 0.0
    %550 = vmatpush2.msra.mxu0 0.0
    %551 = vmatprep.subr.mxu0 0.0
    %552 = vmatpush2.msra.mxu0 0.0
    %553 = vmatprep.subr.mxu0 0.0
    %554 = vmatpush2.msra.mxu0 0.0
    %555 = vmatprep.subr.mxu0 0.0
    %556 = vmatpush2.msra.mxu0 0.0
    %557 = vmatprep.mubr.f32.mxu0 0.0
    %558 = vmatmul.mubr.f32.gmra.mxu0 %v488
    %v559 = vpop.f32.mrf.mxu0
    %v560 = vadd.f32 0.0, %v559
    %v561 = vpop.f32.mrf.mxu0
    %562 = vmatprep.mubr.f32.mxu0 0.0
    %563 = vmatmul.mubr.f32.gmra.mxu0 %v491
    %v564 = vpop.f32.mrf.mxu0
    %v565 = vadd.f32 0.0, %v564
    %v566 = vpop.f32.mrf.mxu0
    %567 = vdwg.mxu0
    %570 = vrot.lane.b32.xlu0 %v253, 64
    %v571 = vpop.permute.xlu0 %570
    %572 = vrot.lane.b32.xlu0 %v254, 64
    %v573 = vpop.permute.xlu0 %572
    %v577 = vsel %vm434, %v477, 0
    %v580 = vsel %vm434, %v478, 0
    %582 = vmatprep.subr.mxu0 0.0
    %583 = vmatpush1.msra.mxu0 0.0
    %584 = vmatprep.subr.mxu0 0.0
    %585 = vmatpush1.msra.mxu0 0.0
    %586 = vmatprep.subr.mxu0 0.0
    %587 = vmatpush1.msra.mxu0 0.0
    %588 = vmatprep.subr.mxu0 0.0
    %589 = vmatpush1.msra.mxu0 0.0
    %590 = vmatprep.subr.mxu0 0.0
    %591 = vmatpush1.msra.mxu0 0.0
    %592 = vmatprep.subr.mxu0 0.0
    %593 = vmatpush1.msra.mxu0 0.0
    %594 = vmatprep.subr.mxu0 0.0
    %595 = vmatpush1.msra.mxu0 0.0
    %596 = vmatprep.subr.mxu0 0.0
    %597 = vmatpush1.msra.mxu0 0.0
    %598 = vmatprep.subr.mxu0 0.0
    %599 = vmatpush1.msra.mxu0 0.0
    %600 = vmatprep.subr.mxu0 0.0
    %601 = vmatpush1.msra.mxu0 0.0
    %602 = vmatprep.subr.mxu0 0.0
    %603 = vmatpush1.msra.mxu0 0.0
    %604 = vmatprep.subr.mxu0 0.0
    %605 = vmatpush1.msra.mxu0 0.0
    %606 = vmatprep.subr.mxu0 0.0
    %607 = vmatpush1.msra.mxu0 0.0
    %608 = vmatprep.subr.mxu0 0.0
    %609 = vmatpush1.msra.mxu0 0.0
    %610 = vmatprep.subr.mxu0 0.0
    %611 = vmatpush1.msra.mxu0 %v573
    %612 = vmatprep.subr.mxu0 0.0
    %613 = vmatpush1.msra.mxu0 %v571
    %614 = vmatprep.subr.mxu0 0.0
    %615 = vmatpush2.msra.mxu0 0.0
    %616 = vmatprep.subr.mxu0 0.0
    %617 = vmatpush2.msra.mxu0 0.0
    %618 = vmatprep.subr.mxu0 0.0
    %619 = vmatpush2.msra.mxu0 0.0
    %620 = vmatprep.subr.mxu0 0.0
    %621 = vmatpush2.msra.mxu0 0.0
    %622 = vmatprep.subr.mxu0 0.0
    %623 = vmatpush2.msra.mxu0 0.0
    %624 = vmatprep.subr.mxu0 0.0
    %625 = vmatpush2.msra.mxu0 0.0
    %626 = vmatprep.subr.mxu0 0.0
    %627 = vmatpush2.msra.mxu0 0.0
    %628 = vmatprep.subr.mxu0 0.0
    %629 = vmatpush2.msra.mxu0 0.0
    %630 = vmatprep.subr.mxu0 0.0
    %631 = vmatpush2.msra.mxu0 0.0
    %632 = vmatprep.subr.mxu0 0.0
    %633 = vmatpush2.msra.mxu0 0.0
    %634 = vmatprep.subr.mxu0 0.0
    %635 = vmatpush2.msra.mxu0 0.0
    %636 = vmatprep.subr.mxu0 0.0
    %637 = vmatpush2.msra.mxu0 0.0
    %638 = vmatprep.subr.mxu0 0.0
    %639 = vmatpush2.msra.mxu0 0.0
    %640 = vmatprep.subr.mxu0 0.0
    %641 = vmatpush2.msra.mxu0 0.0
    %642 = vmatprep.subr.mxu0 0.0
    %643 = vmatpush2.msra.mxu0 0.0
    %644 = vmatprep.subr.mxu0 0.0
    %645 = vmatpush2.msra.mxu0 0.0
    %646 = vmatprep.mubr.f32.mxu0 0.0
    %647 = vmatmul.mubr.f32.gmra.mxu0 %v577
    %v648 = vpop.f32.mrf.mxu0
    %v649 = vadd.f32 0.0, %v648
    %v650 = vpop.f32.mrf.mxu0
    %651 = vmatprep.mubr.f32.mxu0 0.0
    %652 = vmatmul.mubr.f32.gmra.mxu0 %v580
    %v653 = vpop.f32.mrf.mxu0
    %v654 = vadd.f32 0.0, %v653
    %v655 = vpop.f32.mrf.mxu0
    %656 = vdwg.mxu0
    %657 = vrot.lane.b32.xlu0 %v247, 120
    %v658 = vpop.permute.xlu0 %657
    %659 = vrot.lane.b32.xlu0 %v248, 120
    %v660 = vpop.permute.xlu0 %659
    %661 = vrot.lane.b32.xlu0 %v247, 88
    %v662 = vpop.permute.xlu0 %661
    %663 = vrot.lane.b32.xlu0 %v248, 88
    %v664 = vpop.permute.xlu0 %663
    %v665 = vsel %vm261, %v658, 0
    %v667 = vsel %vm261, %v660, 0
    %v669 = vsel %vm261, %v662, 0
    %v671 = vsel %vm261, %v664, 0
    %673 = vmatprep.subr.mxu0 0.0
    %674 = vmatpush1.xpose.msra.mxu0 0.0
    %675 = vmatprep.subr.mxu0 0.0
    %676 = vmatpush1.xpose.msra.mxu0 0.0
    %677 = vmatprep.subr.mxu0 0.0
    %678 = vmatpush1.xpose.msra.mxu0 0.0
    %679 = vmatprep.subr.mxu0 0.0
    %680 = vmatpush1.xpose.msra.mxu0 0.0
    %681 = vmatprep.subr.mxu0 0.0
    %682 = vmatpush1.xpose.msra.mxu0 0.0
    %683 = vmatprep.subr.mxu0 0.0
    %684 = vmatpush1.xpose.msra.mxu0 0.0
    %685 = vmatprep.subr.mxu0 0.0
    %686 = vmatpush1.xpose.msra.mxu0 0.0
    %687 = vmatprep.subr.mxu0 0.0
    %688 = vmatpush1.xpose.msra.mxu0 0.0
    %689 = vmatprep.subr.mxu0 0.0
    %690 = vmatpush1.xpose.msra.mxu0 0.0
    %691 = vmatprep.subr.mxu0 0.0
    %692 = vmatpush1.xpose.msra.mxu0 0.0
    %693 = vmatprep.subr.mxu0 0.0
    %694 = vmatpush1.xpose.msra.mxu0 0.0
    %695 = vmatprep.subr.mxu0 0.0
    %696 = vmatpush1.xpose.msra.mxu0 0.0
    %697 = vmatprep.subr.mxu0 0.0
    %698 = vmatpush1.xpose.msra.mxu0 0.0
    %699 = vmatprep.subr.mxu0 0.0
    %700 = vmatpush1.xpose.msra.mxu0 0.0
    %701 = vmatprep.subr.mxu0 0.0
    %702 = vmatpush1.xpose.msra.mxu0 %v671
    %703 = vmatprep.subr.mxu0 0.0
    %704 = vmatpush1.xpose.msra.mxu0 %v669
    %705 = vmatprep.subr.mxu0 0.0
    %706 = vmatpush2.xpose.msra.mxu0 0.0
    %707 = vmatprep.subr.mxu0 0.0
    %708 = vmatpush2.xpose.msra.mxu0 0.0
    %709 = vmatprep.subr.mxu0 0.0
    %710 = vmatpush2.xpose.msra.mxu0 0.0
    %711 = vmatprep.subr.mxu0 0.0
    %712 = vmatpush2.xpose.msra.mxu0 0.0
    %713 = vmatprep.subr.mxu0 0.0
    %714 = vmatpush2.xpose.msra.mxu0 0.0
    %715 = vmatprep.subr.mxu0 0.0
    %716 = vmatpush2.xpose.msra.mxu0 0.0
    %717 = vmatprep.subr.mxu0 0.0
    %718 = vmatpush2.xpose.msra.mxu0 0.0
    %719 = vmatprep.subr.mxu0 0.0
    %720 = vmatpush2.xpose.msra.mxu0 0.0
    %721 = vmatprep.subr.mxu0 0.0
    %722 = vmatpush2.xpose.msra.mxu0 0.0
    %723 = vmatprep.subr.mxu0 0.0
    %724 = vmatpush2.xpose.msra.mxu0 0.0
    %725 = vmatprep.subr.mxu0 0.0
    %726 = vmatpush2.xpose.msra.mxu0 0.0
    %727 = vmatprep.subr.mxu0 0.0
    %728 = vmatpush2.xpose.msra.mxu0 0.0
    %729 = vmatprep.subr.mxu0 0.0
    %730 = vmatpush2.xpose.msra.mxu0 0.0
    %731 = vmatprep.subr.mxu0 0.0
    %732 = vmatpush2.xpose.msra.mxu0 0.0
    %733 = vmatprep.subr.mxu0 0.0
    %734 = vmatpush2.xpose.msra.mxu0 0.0
    %735 = vmatprep.subr.mxu0 0.0
    %736 = vmatpush2.xpose.msra.mxu0 0.0
    %737 = vmatprep.mubr.f32.mxu0 0.0
    %738 = vmatmul.mubr.f32.gmra.mxu0 %v665
    %v739 = vpop.f32.mrf.mxu0
    %v740 = vadd.f32 0.0, %v739
    %v741 = vpop.f32.mrf.mxu0
    %742 = vmatprep.mubr.f32.mxu0 0.0
    %743 = vmatmul.mubr.f32.gmra.mxu0 %v667
    %v744 = vpop.f32.mrf.mxu0
    %v745 = vadd.f32 0.0, %v744
    %v746 = vpop.f32.mrf.mxu0
    %747 = vdwg.mxu0
    %748 = vrot.lane.b32.xlu0 %v249, 120
    %v749 = vpop.permute.xlu0 %748
    %750 = vrot.lane.b32.xlu0 %v250, 120
    %v751 = vpop.permute.xlu0 %750
    %752 = vrot.lane.b32.xlu0 %v249, 88
    %v753 = vpop.permute.xlu0 %752
    %754 = vrot.lane.b32.xlu0 %v250, 88
    %v755 = vpop.permute.xlu0 %754
    %v756 = vsel %vm261, %v749, 0
    %v758 = vsel %vm261, %v751, 0
    %v760 = vsel %vm261, %v753, 0
    %v762 = vsel %vm261, %v755, 0
    %764 = vmatprep.subr.mxu0 0.0
    %765 = vmatpush1.xpose.msra.mxu0 0.0
    %766 = vmatprep.subr.mxu0 0.0
    %767 = vmatpush1.xpose.msra.mxu0 0.0
    %768 = vmatprep.subr.mxu0 0.0
    %769 = vmatpush1.xpose.msra.mxu0 0.0
    %770 = vmatprep.subr.mxu0 0.0
    %771 = vmatpush1.xpose.msra.mxu0 0.0
    %772 = vmatprep.subr.mxu0 0.0
    %773 = vmatpush1.xpose.msra.mxu0 0.0
    %774 = vmatprep.subr.mxu0 0.0
    %775 = vmatpush1.xpose.msra.mxu0 0.0
    %776 = vmatprep.subr.mxu0 0.0
    %777 = vmatpush1.xpose.msra.mxu0 0.0
    %778 = vmatprep.subr.mxu0 0.0
    %779 = vmatpush1.xpose.msra.mxu0 0.0
    %780 = vmatprep.subr.mxu0 0.0
    %781 = vmatpush1.xpose.msra.mxu0 0.0
    %782 = vmatprep.subr.mxu0 0.0
    %783 = vmatpush1.xpose.msra.mxu0 0.0
    %784 = vmatprep.subr.mxu0 0.0
    %785 = vmatpush1.xpose.msra.mxu0 0.0
    %786 = vmatprep.subr.mxu0 0.0
    %787 = vmatpush1.xpose.msra.mxu0 0.0
    %788 = vmatprep.subr.mxu0 0.0
    %789 = vmatpush1.xpose.msra.mxu0 0.0
    %790 = vmatprep.subr.mxu0 0.0
    %791 = vmatpush1.xpose.msra.mxu0 0.0
    %792 = vmatprep.subr.mxu0 0.0
    %793 = vmatpush1.xpose.msra.mxu0 %v762
    %794 = vmatprep.subr.mxu0 0.0
    %795 = vmatpush1.xpose.msra.mxu0 %v760
    %796 = vmatprep.subr.mxu0 0.0
    %797 = vmatpush2.xpose.msra.mxu0 0.0
    %798 = vmatprep.subr.mxu0 0.0
    %799 = vmatpush2.xpose.msra.mxu0 0.0
    %800 = vmatprep.subr.mxu0 0.0
    %801 = vmatpush2.xpose.msra.mxu0 0.0
    %802 = vmatprep.subr.mxu0 0.0
    %803 = vmatpush2.xpose.msra.mxu0 0.0
    %804 = vmatprep.subr.mxu0 0.0
    %805 = vmatpush2.xpose.msra.mxu0 0.0
    %806 = vmatprep.subr.mxu0 0.0
    %807 = vmatpush2.xpose.msra.mxu0 0.0
    %808 = vmatprep.subr.mxu0 0.0
    %809 = vmatpush2.xpose.msra.mxu0 0.0
    %810 = vmatprep.subr.mxu0 0.0
    %811 = vmatpush2.xpose.msra.mxu0 0.0
    %812 = vmatprep.subr.mxu0 0.0
    %813 = vmatpush2.xpose.msra.mxu0 0.0
    %814 = vmatprep.subr.mxu0 0.0
    %815 = vmatpush2.xpose.msra.mxu0 0.0
    %816 = vmatprep.subr.mxu0 0.0
    %817 = vmatpush2.xpose.msra.mxu0 0.0
    %818 = vmatprep.subr.mxu0 0.0
    %819 = vmatpush2.xpose.msra.mxu0 0.0
    %820 = vmatprep.subr.mxu0 0.0
    %821 = vmatpush2.xpose.msra.mxu0 0.0
    %822 = vmatprep.subr.mxu0 0.0
    %823 = vmatpush2.xpose.msra.mxu0 0.0
    %824 = vmatprep.subr.mxu0 0.0
    %825 = vmatpush2.xpose.msra.mxu0 0.0
    %826 = vmatprep.subr.mxu0 0.0
    %827 = vmatpush2.xpose.msra.mxu0 0.0
    %828 = vmatprep.mubr.f32.mxu0 0.0
    %829 = vmatmul.mubr.f32.gmra.mxu0 %v756
    %v830 = vpop.f32.mrf.mxu0
    %v831 = vadd.f32 0.0, %v830
    %v832 = vpop.f32.mrf.mxu0
    %833 = vmatprep.mubr.f32.mxu0 0.0
    %834 = vmatmul.mubr.f32.gmra.mxu0 %v758
    %v835 = vpop.f32.mrf.mxu0
    %v836 = vadd.f32 0.0, %v835
    %v837 = vpop.f32.mrf.mxu0
    %838 = vdwg.mxu0
    %v839 = vsel %vm434, %v740, -inf
    %840 = vmax.xlane.f32.xlu0 %v839
    %v841 = vpop.xlane.xlu0 %840
    %v842 = vsel %vm434, %v745, -inf
    %843 = vmax.xlane.f32.xlu0 %v842
    %v844 = vpop.xlane.xlu0 %843
    %v845 = vsel %vm434, %v831, -inf
    %846 = vmax.xlane.f32.xlu0 %v845
    %v847 = vpop.xlane.xlu0 %846
    %v848 = vsel %vm434, %v836, -inf
    %849 = vmax.xlane.f32.xlu0 %v848
    %v850 = vpop.xlane.xlu0 %849
    %v851 = vsub.f32 %v740, %v841
    %v852 = vsub.f32 %v745, %v844
    %v853 = vsub.f32 %v831, %v847
    %v854 = vsub.f32 %v836, %v850
    %v855 = vmul.f32 %v851, 1.442695
    %v856 = vpow.pop %v855
    %v857 = vmul.f32 %v852, 1.442695
    %v858 = vpow.pop %v857
    %v859 = vmul.f32 %v853, 1.442695
    %v860 = vpow.pop %v859
    %v861 = vmul.f32 %v854, 1.442695
    %v862 = vpow.pop %v861
    %v863 = vsel %vm434, %v856, 0.0
    %864 = vadd.xlane.f32.xlu0 %v863
    %v865 = vpop.xlane.xlu0 %864
    %v866 = vsel %vm434, %v858, 0.0
    %867 = vadd.xlane.f32.xlu0 %v866
    %v868 = vpop.xlane.xlu0 %867
    %v869 = vsel %vm434, %v860, 0.0
    %870 = vadd.xlane.f32.xlu0 %v869
    %v871 = vpop.xlane.xlu0 %870
    %v872 = vsel %vm434, %v862, 0.0
    %873 = vadd.xlane.f32.xlu0 %v872
    %v874 = vpop.xlane.xlu0 %873
    %v875 = vrcp.pop %v865
    %v876 = vrcp.pop %v868
    %v877 = vrcp.pop %v871
    %v878 = vrcp.pop %v874
    %v879 = vmul.f32 %v856, %v875
    %v880 = vmul.f32 %v858, %v876
    %v881 = vmul.f32 %v860, %v877
    %v882 = vmul.f32 %v862, %v878
    %883 = vrot.lane.b32.xlu0 %v251, 56
    %v884 = vpop.permute.xlu0 %883
    %885 = vrot.lane.b32.xlu0 %v252, 56
    %v886 = vpop.permute.xlu0 %885
    %v890 = vsel %vm434, %v879, 0
    %v893 = vsel %vm434, %v880, 0
    %895 = vmatprep.subr.mxu0 0.0
    %896 = vmatpush1.msra.mxu0 0.0
    %897 = vmatprep.subr.mxu0 0.0
    %898 = vmatpush1.msra.mxu0 0.0
    %899 = vmatprep.subr.mxu0 0.0
    %900 = vmatpush1.msra.mxu0 0.0
    %901 = vmatprep.subr.mxu0 0.0
    %902 = vmatpush1.msra.mxu0 0.0
    %903 = vmatprep.subr.mxu0 0.0
    %904 = vmatpush1.msra.mxu0 0.0
    %905 = vmatprep.subr.mxu0 0.0
    %906 = vmatpush1.msra.mxu0 0.0
    %907 = vmatprep.subr.mxu0 0.0
    %908 = vmatpush1.msra.mxu0 0.0
    %909 = vmatprep.subr.mxu0 0.0
    %910 = vmatpush1.msra.mxu0 0.0
    %911 = vmatprep.subr.mxu0 0.0
    %912 = vmatpush1.msra.mxu0 0.0
    %913 = vmatprep.subr.mxu0 0.0
    %914 = vmatpush1.msra.mxu0 0.0
    %915 = vmatprep.subr.mxu0 0.0
    %916 = vmatpush1.msra.mxu0 0.0
    %917 = vmatprep.subr.mxu0 0.0
    %918 = vmatpush1.msra.mxu0 0.0
    %919 = vmatprep.subr.mxu0 0.0
    %920 = vmatpush1.msra.mxu0 0.0
    %921 = vmatprep.subr.mxu0 0.0
    %922 = vmatpush1.msra.mxu0 0.0
    %923 = vmatprep.subr.mxu0 0.0
    %924 = vmatpush1.msra.mxu0 %v886
    %925 = vmatprep.subr.mxu0 0.0
    %926 = vmatpush1.msra.mxu0 %v884
    %927 = vmatprep.subr.mxu0 0.0
    %928 = vmatpush2.msra.mxu0 0.0
    %929 = vmatprep.subr.mxu0 0.0
    %930 = vmatpush2.msra.mxu0 0.0
    %931 = vmatprep.subr.mxu0 0.0
    %932 = vmatpush2.msra.mxu0 0.0
    %933 = vmatprep.subr.mxu0 0.0
    %934 = vmatpush2.msra.mxu0 0.0
    %935 = vmatprep.subr.mxu0 0.0
    %936 = vmatpush2.msra.mxu0 0.0
    %937 = vmatprep.subr.mxu0 0.0
    %938 = vmatpush2.msra.mxu0 0.0
    %939 = vmatprep.subr.mxu0 0.0
    %940 = vmatpush2.msra.mxu0 0.0
    %941 = vmatprep.subr.mxu0 0.0
    %942 = vmatpush2.msra.mxu0 0.0
    %943 = vmatprep.subr.mxu0 0.0
    %944 = vmatpush2.msra.mxu0 0.0
    %945 = vmatprep.subr.mxu0 0.0
    %946 = vmatpush2.msra.mxu0 0.0
    %947 = vmatprep.subr.mxu0 0.0
    %948 = vmatpush2.msra.mxu0 0.0
    %949 = vmatprep.subr.mxu0 0.0
    %950 = vmatpush2.msra.mxu0 0.0
    %951 = vmatprep.subr.mxu0 0.0
    %952 = vmatpush2.msra.mxu0 0.0
    %953 = vmatprep.subr.mxu0 0.0
    %954 = vmatpush2.msra.mxu0 0.0
    %955 = vmatprep.subr.mxu0 0.0
    %956 = vmatpush2.msra.mxu0 0.0
    %957 = vmatprep.subr.mxu0 0.0
    %958 = vmatpush2.msra.mxu0 0.0
    %959 = vmatprep.mubr.f32.mxu0 0.0
    %960 = vmatmul.mubr.f32.gmra.mxu0 %v890
    %v961 = vpop.f32.mrf.mxu0
    %v962 = vadd.f32 0.0, %v961
    %v963 = vpop.f32.mrf.mxu0
    %964 = vmatprep.mubr.f32.mxu0 0.0
    %965 = vmatmul.mubr.f32.gmra.mxu0 %v893
    %v966 = vpop.f32.mrf.mxu0
    %v967 = vadd.f32 0.0, %v966
    %v968 = vpop.f32.mrf.mxu0
    %969 = vdwg.mxu0
    %970 = vrot.lane.b32.xlu0 %v253, 56
    %v971 = vpop.permute.xlu0 %970
    %972 = vrot.lane.b32.xlu0 %v254, 56
    %v973 = vpop.permute.xlu0 %972
    %v977 = vsel %vm434, %v881, 0
    %v980 = vsel %vm434, %v882, 0
    %982 = vmatprep.subr.mxu0 0.0
    %983 = vmatpush1.msra.mxu0 0.0
    %984 = vmatprep.subr.mxu0 0.0
    %985 = vmatpush1.msra.mxu0 0.0
    %986 = vmatprep.subr.mxu0 0.0
    %987 = vmatpush1.msra.mxu0 0.0
    %988 = vmatprep.subr.mxu0 0.0
    %989 = vmatpush1.msra.mxu0 0.0
    %990 = vmatprep.subr.mxu0 0.0
    %991 = vmatpush1.msra.mxu0 0.0
    %992 = vmatprep.subr.mxu0 0.0
    %993 = vmatpush1.msra.mxu0 0.0
    %994 = vmatprep.subr.mxu0 0.0
    %995 = vmatpush1.msra.mxu0 0.0
    %996 = vmatprep.subr.mxu0 0.0
    %997 = vmatpush1.msra.mxu0 0.0
    %998 = vmatprep.subr.mxu0 0.0
    %999 = vmatpush1.msra.mxu0 0.0
    %1000 = vmatprep.subr.mxu0 0.0
    %1001 = vmatpush1.msra.mxu0 0.0
    %1002 = vmatprep.subr.mxu0 0.0
    %1003 = vmatpush1.msra.mxu0 0.0
    %1004 = vmatprep.subr.mxu0 0.0
    %1005 = vmatpush1.msra.mxu0 0.0
    %1006 = vmatprep.subr.mxu0 0.0
    %1007 = vmatpush1.msra.mxu0 0.0
    %1008 = vmatprep.subr.mxu0 0.0
    %1009 = vmatpush1.msra.mxu0 0.0
    %1010 = vmatprep.subr.mxu0 0.0
    %1011 = vmatpush1.msra.mxu0 %v973
    %1012 = vmatprep.subr.mxu0 0.0
    %1013 = vmatpush1.msra.mxu0 %v971
    %1014 = vmatprep.subr.mxu0 0.0
    %1015 = vmatpush2.msra.mxu0 0.0
    %1016 = vmatprep.subr.mxu0 0.0
    %1017 = vmatpush2.msra.mxu0 0.0
    %1018 = vmatprep.subr.mxu0 0.0
    %1019 = vmatpush2.msra.mxu0 0.0
    %1020 = vmatprep.subr.mxu0 0.0
    %1021 = vmatpush2.msra.mxu0 0.0
    %1022 = vmatprep.subr.mxu0 0.0
    %1023 = vmatpush2.msra.mxu0 0.0
    %1024 = vmatprep.subr.mxu0 0.0
    %1025 = vmatpush2.msra.mxu0 0.0
    %1026 = vmatprep.subr.mxu0 0.0
    %1027 = vmatpush2.msra.mxu0 0.0
    %1028 = vmatprep.subr.mxu0 0.0
    %1029 = vmatpush2.msra.mxu0 0.0
    %1030 = vmatprep.subr.mxu0 0.0
    %1031 = vmatpush2.msra.mxu0 0.0
    %1032 = vmatprep.subr.mxu0 0.0
    %1033 = vmatpush2.msra.mxu0 0.0
    %1034 = vmatprep.subr.mxu0 0.0
    %1035 = vmatpush2.msra.mxu0 0.0
    %1036 = vmatprep.subr.mxu0 0.0
    %1037 = vmatpush2.msra.mxu0 0.0
    %1038 = vmatprep.subr.mxu0 0.0
    %1039 = vmatpush2.msra.mxu0 0.0
    %1040 = vmatprep.subr.mxu0 0.0
    %1041 = vmatpush2.msra.mxu0 0.0
    %1042 = vmatprep.subr.mxu0 0.0
    %1043 = vmatpush2.msra.mxu0 0.0
    %1044 = vmatprep.subr.mxu0 0.0
    %1045 = vmatpush2.msra.mxu0 0.0
    %1046 = vmatprep.mubr.f32.mxu0 0.0
    %1047 = vmatmul.mubr.f32.gmra.mxu0 %v977
    %v1048 = vpop.f32.mrf.mxu0
    %v1049 = vadd.f32 0.0, %v1048
    %v1050 = vpop.f32.mrf.mxu0
    %1051 = vmatprep.mubr.f32.mxu0 0.0
    %1052 = vmatmul.mubr.f32.gmra.mxu0 %v980
    %v1053 = vpop.f32.mrf.mxu0
    %v1054 = vadd.f32 0.0, %v1053
    %v1055 = vpop.f32.mrf.mxu0
    %1056 = vdwg.mxu0
    %1057 = vrot.lane.b32.xlu0 %v247, 112
    %v1058 = vpop.permute.xlu0 %1057
    %1059 = vrot.lane.b32.xlu0 %v248, 112
    %v1060 = vpop.permute.xlu0 %1059
    %1061 = vrot.lane.b32.xlu0 %v247, 80
    %v1062 = vpop.permute.xlu0 %1061
    %1063 = vrot.lane.b32.xlu0 %v248, 80
    %v1064 = vpop.permute.xlu0 %1063
    %v1065 = vsel %vm261, %v1058, 0
    %v1067 = vsel %vm261, %v1060, 0
    %v1069 = vsel %vm261, %v1062, 0
    %v1071 = vsel %vm261, %v1064, 0
    %1073 = vmatprep.subr.mxu0 0.0
    %1074 = vmatpush1.xpose.msra.mxu0 0.0
    %1075 = vmatprep.subr.mxu0 0.0
    %1076 = vmatpush1.xpose.msra.mxu0 0.0
    %1077 = vmatprep.subr.mxu0 0.0
    %1078 = vmatpush1.xpose.msra.mxu0 0.0
    %1079 = vmatprep.subr.mxu0 0.0
    %1080 = vmatpush1.xpose.msra.mxu0 0.0
    %1081 = vmatprep.subr.mxu0 0.0
    %1082 = vmatpush1.xpose.msra.mxu0 0.0
    %1083 = vmatprep.subr.mxu0 0.0
    %1084 = vmatpush1.xpose.msra.mxu0 0.0
    %1085 = vmatprep.subr.mxu0 0.0
    %1086 = vmatpush1.xpose.msra.mxu0 0.0
    %1087 = vmatprep.subr.mxu0 0.0
    %1088 = vmatpush1.xpose.msra.mxu0 0.0
    %1089 = vmatprep.subr.mxu0 0.0
    %1090 = vmatpush1.xpose.msra.mxu0 0.0
    %1091 = vmatprep.subr.mxu0 0.0
    %1092 = vmatpush1.xpose.msra.mxu0 0.0
    %1093 = vmatprep.subr.mxu0 0.0
    %1094 = vmatpush1.xpose.msra.mxu0 0.0
    %1095 = vmatprep.subr.mxu0 0.0
    %1096 = vmatpush1.xpose.msra.mxu0 0.0
    %1097 = vmatprep.subr.mxu0 0.0
    %1098 = vmatpush1.xpose.msra.mxu0 0.0
    %1099 = vmatprep.subr.mxu0 0.0
    %1100 = vmatpush1.xpose.msra.mxu0 0.0
    %1101 = vmatprep.subr.mxu0 0.0
    %1102 = vmatpush1.xpose.msra.mxu0 %v1071
    %1103 = vmatprep.subr.mxu0 0.0
    %1104 = vmatpush1.xpose.msra.mxu0 %v1069
    %1105 = vmatprep.subr.mxu0 0.0
    %1106 = vmatpush2.xpose.msra.mxu0 0.0
    %1107 = vmatprep.subr.mxu0 0.0
    %1108 = vmatpush2.xpose.msra.mxu0 0.0
    %1109 = vmatprep.subr.mxu0 0.0
    %1110 = vmatpush2.xpose.msra.mxu0 0.0
    %1111 = vmatprep.subr.mxu0 0.0
    %1112 = vmatpush2.xpose.msra.mxu0 0.0
    %1113 = vmatprep.subr.mxu0 0.0
    %1114 = vmatpush2.xpose.msra.mxu0 0.0
    %1115 = vmatprep.subr.mxu0 0.0
    %1116 = vmatpush2.xpose.msra.mxu0 0.0
    %1117 = vmatprep.subr.mxu0 0.0
    %1118 = vmatpush2.xpose.msra.mxu0 0.0
    %1119 = vmatprep.subr.mxu0 0.0
    %1120 = vmatpush2.xpose.msra.mxu0 0.0
    %1121 = vmatprep.subr.mxu0 0.0
    %1122 = vmatpush2.xpose.msra.mxu0 0.0
    %1123 = vmatprep.subr.mxu0 0.0
    %1124 = vmatpush2.xpose.msra.mxu0 0.0
    %1125 = vmatprep.subr.mxu0 0.0
    %1126 = vmatpush2.xpose.msra.mxu0 0.0
    %1127 = vmatprep.subr.mxu0 0.0
    %1128 = vmatpush2.xpose.msra.mxu0 0.0
    %1129 = vmatprep.subr.mxu0 0.0
    %1130 = vmatpush2.xpose.msra.mxu0 0.0
    %1131 = vmatprep.subr.mxu0 0.0
    %1132 = vmatpush2.xpose.msra.mxu0 0.0
    %1133 = vmatprep.subr.mxu0 0.0
    %1134 = vmatpush2.xpose.msra.mxu0 0.0
    %1135 = vmatprep.subr.mxu0 0.0
    %1136 = vmatpush2.xpose.msra.mxu0 0.0
    %1137 = vmatprep.mubr.f32.mxu0 0.0
    %1138 = vmatmul.mubr.f32.gmra.mxu0 %v1065
    %v1139 = vpop.f32.mrf.mxu0
    %v1140 = vadd.f32 0.0, %v1139
    %v1141 = vpop.f32.mrf.mxu0
    %1142 = vmatprep.mubr.f32.mxu0 0.0
    %1143 = vmatmul.mubr.f32.gmra.mxu0 %v1067
    %v1144 = vpop.f32.mrf.mxu0
    %v1145 = vadd.f32 0.0, %v1144
    %v1146 = vpop.f32.mrf.mxu0
    %1147 = vdwg.mxu0
    %1148 = vrot.lane.b32.xlu0 %v249, 112
    %v1149 = vpop.permute.xlu0 %1148
    %1150 = vrot.lane.b32.xlu0 %v250, 112
    %v1151 = vpop.permute.xlu0 %1150
    %1152 = vrot.lane.b32.xlu0 %v249, 80
    %v1153 = vpop.permute.xlu0 %1152
    %1154 = vrot.lane.b32.xlu0 %v250, 80
    %v1155 = vpop.permute.xlu0 %1154
    %v1156 = vsel %vm261, %v1149, 0
    %v1158 = vsel %vm261, %v1151, 0
    %v1160 = vsel %vm261, %v1153, 0
    %v1162 = vsel %vm261, %v1155, 0
    %1164 = vmatprep.subr.mxu0 0.0
    %1165 = vmatpush1.xpose.msra.mxu0 0.0
    %1166 = vmatprep.subr.mxu0 0.0
    %1167 = vmatpush1.xpose.msra.mxu0 0.0
    %1168 = vmatprep.subr.mxu0 0.0
    %1169 = vmatpush1.xpose.msra.mxu0 0.0
    %1170 = vmatprep.subr.mxu0 0.0
    %1171 = vmatpush1.xpose.msra.mxu0 0.0
    %1172 = vmatprep.subr.mxu0 0.0
    %1173 = vmatpush1.xpose.msra.mxu0 0.0
    %1174 = vmatprep.subr.mxu0 0.0
    %1175 = vmatpush1.xpose.msra.mxu0 0.0
    %1176 = vmatprep.subr.mxu0 0.0
    %1177 = vmatpush1.xpose.msra.mxu0 0.0
    %1178 = vmatprep.subr.mxu0 0.0
    %1179 = vmatpush1.xpose.msra.mxu0 0.0
    %1180 = vmatprep.subr.mxu0 0.0
    %1181 = vmatpush1.xpose.msra.mxu0 0.0
    %1182 = vmatprep.subr.mxu0 0.0
    %1183 = vmatpush1.xpose.msra.mxu0 0.0
    %1184 = vmatprep.subr.mxu0 0.0
    %1185 = vmatpush1.xpose.msra.mxu0 0.0
    %1186 = vmatprep.subr.mxu0 0.0
    %1187 = vmatpush1.xpose.msra.mxu0 0.0
    %1188 = vmatprep.subr.mxu0 0.0
    %1189 = vmatpush1.xpose.msra.mxu0 0.0
    %1190 = vmatprep.subr.mxu0 0.0
    %1191 = vmatpush1.xpose.msra.mxu0 0.0
    %1192 = vmatprep.subr.mxu0 0.0
    %1193 = vmatpush1.xpose.msra.mxu0 %v1162
    %1194 = vmatprep.subr.mxu0 0.0
    %1195 = vmatpush1.xpose.msra.mxu0 %v1160
    %1196 = vmatprep.subr.mxu0 0.0
    %1197 = vmatpush2.xpose.msra.mxu0 0.0
    %1198 = vmatprep.subr.mxu0 0.0
    %1199 = vmatpush2.xpose.msra.mxu0 0.0
    %1200 = vmatprep.subr.mxu0 0.0
    %1201 = vmatpush2.xpose.msra.mxu0 0.0
    %1202 = vmatprep.subr.mxu0 0.0
    %1203 = vmatpush2.xpose.msra.mxu0 0.0
    %1204 = vmatprep.subr.mxu0 0.0
    %1205 = vmatpush2.xpose.msra.mxu0 0.0
    %1206 = vmatprep.subr.mxu0 0.0
    %1207 = vmatpush2.xpose.msra.mxu0 0.0
    %1208 = vmatprep.subr.mxu0 0.0
    %1209 = vmatpush2.xpose.msra.mxu0 0.0
    %1210 = vmatprep.subr.mxu0 0.0
    %1211 = vmatpush2.xpose.msra.mxu0 0.0
    %1212 = vmatprep.subr.mxu0 0.0
    %1213 = vmatpush2.xpose.msra.mxu0 0.0
    %1214 = vmatprep.subr.mxu0 0.0
    %1215 = vmatpush2.xpose.msra.mxu0 0.0
    %1216 = vmatprep.subr.mxu0 0.0
    %1217 = vmatpush2.xpose.msra.mxu0 0.0
    %1218 = vmatprep.subr.mxu0 0.0
    %1219 = vmatpush2.xpose.msra.mxu0 0.0
    %1220 = vmatprep.subr.mxu0 0.0
    %1221 = vmatpush2.xpose.msra.mxu0 0.0
    %1222 = vmatprep.subr.mxu0 0.0
    %1223 = vmatpush2.xpose.msra.mxu0 0.0
    %1224 = vmatprep.subr.mxu0 0.0
    %1225 = vmatpush2.xpose.msra.mxu0 0.0
    %1226 = vmatprep.subr.mxu0 0.0
    %1227 = vmatpush2.xpose.msra.mxu0 0.0
    %1228 = vmatprep.mubr.f32.mxu0 0.0
    %1229 = vmatmul.mubr.f32.gmra.mxu0 %v1156
    %v1230 = vpop.f32.mrf.mxu0
    %v1231 = vadd.f32 0.0, %v1230
    %v1232 = vpop.f32.mrf.mxu0
    %1233 = vmatprep.mubr.f32.mxu0 0.0
    %1234 = vmatmul.mubr.f32.gmra.mxu0 %v1158
    %v1235 = vpop.f32.mrf.mxu0
    %v1236 = vadd.f32 0.0, %v1235
    %v1237 = vpop.f32.mrf.mxu0
    %1238 = vdwg.mxu0
    %v1239 = vsel %vm434, %v1140, -inf
    %1240 = vmax.xlane.f32.xlu0 %v1239
    %v1241 = vpop.xlane.xlu0 %1240
    %v1242 = vsel %vm434, %v1145, -inf
    %1243 = vmax.xlane.f32.xlu0 %v1242
    %v1244 = vpop.xlane.xlu0 %1243
    %v1245 = vsel %vm434, %v1231, -inf
    %1246 = vmax.xlane.f32.xlu0 %v1245
    %v1247 = vpop.xlane.xlu0 %1246
    %v1248 = vsel %vm434, %v1236, -inf
    %1249 = vmax.xlane.f32.xlu0 %v1248
    %v1250 = vpop.xlane.xlu0 %1249
    %v1251 = vsub.f32 %v1140, %v1241
    %v1252 = vsub.f32 %v1145, %v1244
    %v1253 = vsub.f32 %v1231, %v1247
    %v1254 = vsub.f32 %v1236, %v1250
    %v1255 = vmul.f32 %v1251, 1.442695
    %v1256 = vpow.pop %v1255
    %v1257 = vmul.f32 %v1252, 1.442695
    %v1258 = vpow.pop %v1257
    %v1259 = vmul.f32 %v1253, 1.442695
    %v1260 = vpow.pop %v1259
    %v1261 = vmul.f32 %v1254, 1.442695
    %v1262 = vpow.pop %v1261
    %v1263 = vsel %vm434, %v1256, 0.0
    %1264 = vadd.xlane.f32.xlu0 %v1263
    %v1265 = vpop.xlane.xlu0 %1264
    %v1266 = vsel %vm434, %v1258, 0.0
    %1267 = vadd.xlane.f32.xlu0 %v1266
    %v1268 = vpop.xlane.xlu0 %1267
    %v1269 = vsel %vm434, %v1260, 0.0
    %1270 = vadd.xlane.f32.xlu0 %v1269
    %v1271 = vpop.xlane.xlu0 %1270
    %v1272 = vsel %vm434, %v1262, 0.0
    %1273 = vadd.xlane.f32.xlu0 %v1272
    %v1274 = vpop.xlane.xlu0 %1273
    %v1275 = vrcp.pop %v1265
    %v1276 = vrcp.pop %v1268
    %v1277 = vrcp.pop %v1271
    %v1278 = vrcp.pop %v1274
    %v1279 = vmul.f32 %v1256, %v1275
    %v1280 = vmul.f32 %v1258, %v1276
    %v1281 = vmul.f32 %v1260, %v1277
    %v1282 = vmul.f32 %v1262, %v1278
    %1283 = vrot.lane.b32.xlu0 %v251, 48
    %v1284 = vpop.permute.xlu0 %1283
    %1285 = vrot.lane.b32.xlu0 %v252, 48
    %v1286 = vpop.permute.xlu0 %1285
    %v1290 = vsel %vm434, %v1279, 0
    %v1293 = vsel %vm434, %v1280, 0
    %1295 = vmatprep.subr.mxu0 0.0
    %1296 = vmatpush1.msra.mxu0 0.0
    %1297 = vmatprep.subr.mxu0 0.0
    %1298 = vmatpush1.msra.mxu0 0.0
    %1299 = vmatprep.subr.mxu0 0.0
    %1300 = vmatpush1.msra.mxu0 0.0
    %1301 = vmatprep.subr.mxu0 0.0
    %1302 = vmatpush1.msra.mxu0 0.0
    %1303 = vmatprep.subr.mxu0 0.0
    %1304 = vmatpush1.msra.mxu0 0.0
    %1305 = vmatprep.subr.mxu0 0.0
    %1306 = vmatpush1.msra.mxu0 0.0
    %1307 = vmatprep.subr.mxu0 0.0
    %1308 = vmatpush1.msra.mxu0 0.0
    %1309 = vmatprep.subr.mxu0 0.0
    %1310 = vmatpush1.msra.mxu0 0.0
    %1311 = vmatprep.subr.mxu0 0.0
    %1312 = vmatpush1.msra.mxu0 0.0
    %1313 = vmatprep.subr.mxu0 0.0
    %1314 = vmatpush1.msra.mxu0 0.0
    %1315 = vmatprep.subr.mxu0 0.0
    %1316 = vmatpush1.msra.mxu0 0.0
    %1317 = vmatprep.subr.mxu0 0.0
    %1318 = vmatpush1.msra.mxu0 0.0
    %1319 = vmatprep.subr.mxu0 0.0
    %1320 = vmatpush1.msra.mxu0 0.0
    %1321 = vmatprep.subr.mxu0 0.0
    %1322 = vmatpush1.msra.mxu0 0.0
    %1323 = vmatprep.subr.mxu0 0.0
    %1324 = vmatpush1.msra.mxu0 %v1286
    %1325 = vmatprep.subr.mxu0 0.0
    %1326 = vmatpush1.msra.mxu0 %v1284
    %1327 = vmatprep.subr.mxu0 0.0
    %1328 = vmatpush2.msra.mxu0 0.0
    %1329 = vmatprep.subr.mxu0 0.0
    %1330 = vmatpush2.msra.mxu0 0.0
    %1331 = vmatprep.subr.mxu0 0.0
    %1332 = vmatpush2.msra.mxu0 0.0
    %1333 = vmatprep.subr.mxu0 0.0
    %1334 = vmatpush2.msra.mxu0 0.0
    %1335 = vmatprep.subr.mxu0 0.0
    %1336 = vmatpush2.msra.mxu0 0.0
    %1337 = vmatprep.subr.mxu0 0.0
    %1338 = vmatpush2.msra.mxu0 0.0
    %1339 = vmatprep.subr.mxu0 0.0
    %1340 = vmatpush2.msra.mxu0 0.0
    %1341 = vmatprep.subr.mxu0 0.0
    %1342 = vmatpush2.msra.mxu0 0.0
    %1343 = vmatprep.subr.mxu0 0.0
    %1344 = vmatpush2.msra.mxu0 0.0
    %1345 = vmatprep.subr.mxu0 0.0
    %1346 = vmatpush2.msra.mxu0 0.0
    %1347 = vmatprep.subr.mxu0 0.0
    %1348 = vmatpush2.msra.mxu0 0.0
    %1349 = vmatprep.subr.mxu0 0.0
    %1350 = vmatpush2.msra.mxu0 0.0
    %1351 = vmatprep.subr.mxu0 0.0
    %1352 = vmatpush2.msra.mxu0 0.0
    %1353 = vmatprep.subr.mxu0 0.0
    %1354 = vmatpush2.msra.mxu0 0.0
    %1355 = vmatprep.subr.mxu0 0.0
    %1356 = vmatpush2.msra.mxu0 0.0
    %1357 = vmatprep.subr.mxu0 0.0
    %1358 = vmatpush2.msra.mxu0 0.0
    %1359 = vmatprep.mubr.f32.mxu0 0.0
    %1360 = vmatmul.mubr.f32.gmra.mxu0 %v1290
    %v1361 = vpop.f32.mrf.mxu0
    %v1362 = vadd.f32 0.0, %v1361
    %v1363 = vpop.f32.mrf.mxu0
    %1364 = vmatprep.mubr.f32.mxu0 0.0
    %1365 = vmatmul.mubr.f32.gmra.mxu0 %v1293
    %v1366 = vpop.f32.mrf.mxu0
    %v1367 = vadd.f32 0.0, %v1366
    %v1368 = vpop.f32.mrf.mxu0
    %1369 = vdwg.mxu0
    %1370 = vrot.lane.b32.xlu0 %v253, 48
    %v1371 = vpop.permute.xlu0 %1370
    %1372 = vrot.lane.b32.xlu0 %v254, 48
    %v1373 = vpop.permute.xlu0 %1372
    %v1377 = vsel %vm434, %v1281, 0
    %v1380 = vsel %vm434, %v1282, 0
    %1382 = vmatprep.subr.mxu0 0.0
    %1383 = vmatpush1.msra.mxu0 0.0
    %1384 = vmatprep.subr.mxu0 0.0
    %1385 = vmatpush1.msra.mxu0 0.0
    %1386 = vmatprep.subr.mxu0 0.0
    %1387 = vmatpush1.msra.mxu0 0.0
    %1388 = vmatprep.subr.mxu0 0.0
    %1389 = vmatpush1.msra.mxu0 0.0
    %1390 = vmatprep.subr.mxu0 0.0
    %1391 = vmatpush1.msra.mxu0 0.0
    %1392 = vmatprep.subr.mxu0 0.0
    %1393 = vmatpush1.msra.mxu0 0.0
    %1394 = vmatprep.subr.mxu0 0.0
    %1395 = vmatpush1.msra.mxu0 0.0
    %1396 = vmatprep.subr.mxu0 0.0
    %1397 = vmatpush1.msra.mxu0 0.0
    %1398 = vmatprep.subr.mxu0 0.0
    %1399 = vmatpush1.msra.mxu0 0.0
    %1400 = vmatprep.subr.mxu0 0.0
    %1401 = vmatpush1.msra.mxu0 0.0
    %1402 = vmatprep.subr.mxu0 0.0
    %1403 = vmatpush1.msra.mxu0 0.0
    %1404 = vmatprep.subr.mxu0 0.0
    %1405 = vmatpush1.msra.mxu0 0.0
    %1406 = vmatprep.subr.mxu0 0.0
    %1407 = vmatpush1.msra.mxu0 0.0
    %1408 = vmatprep.subr.mxu0 0.0
    %1409 = vmatpush1.msra.mxu0 0.0
    %1410 = vmatprep.subr.mxu0 0.0
    %1411 = vmatpush1.msra.mxu0 %v1373
    %1412 = vmatprep.subr.mxu0 0.0
    %1413 = vmatpush1.msra.mxu0 %v1371
    %1414 = vmatprep.subr.mxu0 0.0
    %1415 = vmatpush2.msra.mxu0 0.0
    %1416 = vmatprep.subr.mxu0 0.0
    %1417 = vmatpush2.msra.mxu0 0.0
    %1418 = vmatprep.subr.mxu0 0.0
    %1419 = vmatpush2.msra.mxu0 0.0
    %1420 = vmatprep.subr.mxu0 0.0
    %1421 = vmatpush2.msra.mxu0 0.0
    %1422 = vmatprep.subr.mxu0 0.0
    %1423 = vmatpush2.msra.mxu0 0.0
    %1424 = vmatprep.subr.mxu0 0.0
    %1425 = vmatpush2.msra.mxu0 0.0
    %1426 = vmatprep.subr.mxu0 0.0
    %1427 = vmatpush2.msra.mxu0 0.0
    %1428 = vmatprep.subr.mxu0 0.0
    %1429 = vmatpush2.msra.mxu0 0.0
    %1430 = vmatprep.subr.mxu0 0.0
    %1431 = vmatpush2.msra.mxu0 0.0
    %1432 = vmatprep.subr.mxu0 0.0
    %1433 = vmatpush2.msra.mxu0 0.0
    %1434 = vmatprep.subr.mxu0 0.0
    %1435 = vmatpush2.msra.mxu0 0.0
    %1436 = vmatprep.subr.mxu0 0.0
    %1437 = vmatpush2.msra.mxu0 0.0
    %1438 = vmatprep.subr.mxu0 0.0
    %1439 = vmatpush2.msra.mxu0 0.0
    %1440 = vmatprep.subr.mxu0 0.0
    %1441 = vmatpush2.msra.mxu0 0.0
    %1442 = vmatprep.subr.mxu0 0.0
    %1443 = vmatpush2.msra.mxu0 0.0
    %1444 = vmatprep.subr.mxu0 0.0
    %1445 = vmatpush2.msra.mxu0 0.0
    %1446 = vmatprep.mubr.f32.mxu0 0.0
    %1447 = vmatmul.mubr.f32.gmra.mxu0 %v1377
    %v1448 = vpop.f32.mrf.mxu0
    %v1449 = vadd.f32 0.0, %v1448
    %v1450 = vpop.f32.mrf.mxu0
    %1451 = vmatprep.mubr.f32.mxu0 0.0
    %1452 = vmatmul.mubr.f32.gmra.mxu0 %v1380
    %v1453 = vpop.f32.mrf.mxu0
    %v1454 = vadd.f32 0.0, %v1453
    %v1455 = vpop.f32.mrf.mxu0
    %1456 = vdwg.mxu0
    %1457 = vrot.lane.b32.xlu0 %v247, 104
    %v1458 = vpop.permute.xlu0 %1457
    %1459 = vrot.lane.b32.xlu0 %v248, 104
    %v1460 = vpop.permute.xlu0 %1459
    %1461 = vrot.lane.b32.xlu0 %v247, 72
    %v1462 = vpop.permute.xlu0 %1461
    %1463 = vrot.lane.b32.xlu0 %v248, 72
    %v1464 = vpop.permute.xlu0 %1463
    %v1465 = vsel %vm261, %v1458, 0
    %v1467 = vsel %vm261, %v1460, 0
    %v1469 = vsel %vm261, %v1462, 0
    %v1471 = vsel %vm261, %v1464, 0
    %1473 = vmatprep.subr.mxu0 0.0
    %1474 = vmatpush1.xpose.msra.mxu0 0.0
    %1475 = vmatprep.subr.mxu0 0.0
    %1476 = vmatpush1.xpose.msra.mxu0 0.0
    %1477 = vmatprep.subr.mxu0 0.0
    %1478 = vmatpush1.xpose.msra.mxu0 0.0
    %1479 = vmatprep.subr.mxu0 0.0
    %1480 = vmatpush1.xpose.msra.mxu0 0.0
    %1481 = vmatprep.subr.mxu0 0.0
    %1482 = vmatpush1.xpose.msra.mxu0 0.0
    %1483 = vmatprep.subr.mxu0 0.0
    %1484 = vmatpush1.xpose.msra.mxu0 0.0
    %1485 = vmatprep.subr.mxu0 0.0
    %1486 = vmatpush1.xpose.msra.mxu0 0.0
    %1487 = vmatprep.subr.mxu0 0.0
    %1488 = vmatpush1.xpose.msra.mxu0 0.0
    %1489 = vmatprep.subr.mxu0 0.0
    %1490 = vmatpush1.xpose.msra.mxu0 0.0
    %1491 = vmatprep.subr.mxu0 0.0
    %1492 = vmatpush1.xpose.msra.mxu0 0.0
    %1493 = vmatprep.subr.mxu0 0.0
    %1494 = vmatpush1.xpose.msra.mxu0 0.0
    %1495 = vmatprep.subr.mxu0 0.0
    %1496 = vmatpush1.xpose.msra.mxu0 0.0
    %1497 = vmatprep.subr.mxu0 0.0
    %1498 = vmatpush1.xpose.msra.mxu0 0.0
    %1499 = vmatprep.subr.mxu0 0.0
    %1500 = vmatpush1.xpose.msra.mxu0 0.0
    %1501 = vmatprep.subr.mxu0 0.0
    %1502 = vmatpush1.xpose.msra.mxu0 %v1471
    %1503 = vmatprep.subr.mxu0 0.0
    %1504 = vmatpush1.xpose.msra.mxu0 %v1469
    %1505 = vmatprep.subr.mxu0 0.0
    %1506 = vmatpush2.xpose.msra.mxu0 0.0
    %1507 = vmatprep.subr.mxu0 0.0
    %1508 = vmatpush2.xpose.msra.mxu0 0.0
    %1509 = vmatprep.subr.mxu0 0.0
    %1510 = vmatpush2.xpose.msra.mxu0 0.0
    %1511 = vmatprep.subr.mxu0 0.0
    %1512 = vmatpush2.xpose.msra.mxu0 0.0
    %1513 = vmatprep.subr.mxu0 0.0
    %1514 = vmatpush2.xpose.msra.mxu0 0.0
    %1515 = vmatprep.subr.mxu0 0.0
    %1516 = vmatpush2.xpose.msra.mxu0 0.0
    %1517 = vmatprep.subr.mxu0 0.0
    %1518 = vmatpush2.xpose.msra.mxu0 0.0
    %1519 = vmatprep.subr.mxu0 0.0
    %1520 = vmatpush2.xpose.msra.mxu0 0.0
    %1521 = vmatprep.subr.mxu0 0.0
    %1522 = vmatpush2.xpose.msra.mxu0 0.0
    %1523 = vmatprep.subr.mxu0 0.0
    %1524 = vmatpush2.xpose.msra.mxu0 0.0
    %1525 = vmatprep.subr.mxu0 0.0
    %1526 = vmatpush2.xpose.msra.mxu0 0.0
    %1527 = vmatprep.subr.mxu0 0.0
    %1528 = vmatpush2.xpose.msra.mxu0 0.0
    %1529 = vmatprep.subr.mxu0 0.0
    %1530 = vmatpush2.xpose.msra.mxu0 0.0
    %1531 = vmatprep.subr.mxu0 0.0
    %1532 = vmatpush2.xpose.msra.mxu0 0.0
    %1533 = vmatprep.subr.mxu0 0.0
    %1534 = vmatpush2.xpose.msra.mxu0 0.0
    %1535 = vmatprep.subr.mxu0 0.0
    %1536 = vmatpush2.xpose.msra.mxu0 0.0
    %1537 = vmatprep.mubr.f32.mxu0 0.0
    %1538 = vmatmul.mubr.f32.gmra.mxu0 %v1465
    %v1539 = vpop.f32.mrf.mxu0
    %v1540 = vadd.f32 0.0, %v1539
    %v1541 = vpop.f32.mrf.mxu0
    %1542 = vmatprep.mubr.f32.mxu0 0.0
    %1543 = vmatmul.mubr.f32.gmra.mxu0 %v1467
    %v1544 = vpop.f32.mrf.mxu0
    %v1545 = vadd.f32 0.0, %v1544
    %v1546 = vpop.f32.mrf.mxu0
    %1547 = vdwg.mxu0
    %1548 = vrot.lane.b32.xlu0 %v249, 104
    %v1549 = vpop.permute.xlu0 %1548
    %1550 = vrot.lane.b32.xlu0 %v250, 104
    %v1551 = vpop.permute.xlu0 %1550
    %1552 = vrot.lane.b32.xlu0 %v249, 72
    %v1553 = vpop.permute.xlu0 %1552
    %1554 = vrot.lane.b32.xlu0 %v250, 72
    %v1555 = vpop.permute.xlu0 %1554
    %v1556 = vsel %vm261, %v1549, 0
    %v1558 = vsel %vm261, %v1551, 0
    %v1560 = vsel %vm261, %v1553, 0
    %v1562 = vsel %vm261, %v1555, 0
    %1564 = vmatprep.subr.mxu0 0.0
    %1565 = vmatpush1.xpose.msra.mxu0 0.0
    %1566 = vmatprep.subr.mxu0 0.0
    %1567 = vmatpush1.xpose.msra.mxu0 0.0
    %1568 = vmatprep.subr.mxu0 0.0
    %1569 = vmatpush1.xpose.msra.mxu0 0.0
    %1570 = vmatprep.subr.mxu0 0.0
    %1571 = vmatpush1.xpose.msra.mxu0 0.0
    %1572 = vmatprep.subr.mxu0 0.0
    %1573 = vmatpush1.xpose.msra.mxu0 0.0
    %1574 = vmatprep.subr.mxu0 0.0
    %1575 = vmatpush1.xpose.msra.mxu0 0.0
    %1576 = vmatprep.subr.mxu0 0.0
    %1577 = vmatpush1.xpose.msra.mxu0 0.0
    %1578 = vmatprep.subr.mxu0 0.0
    %1579 = vmatpush1.xpose.msra.mxu0 0.0
    %1580 = vmatprep.subr.mxu0 0.0
    %1581 = vmatpush1.xpose.msra.mxu0 0.0
    %1582 = vmatprep.subr.mxu0 0.0
    %1583 = vmatpush1.xpose.msra.mxu0 0.0
    %1584 = vmatprep.subr.mxu0 0.0
    %1585 = vmatpush1.xpose.msra.mxu0 0.0
    %1586 = vmatprep.subr.mxu0 0.0
    %1587 = vmatpush1.xpose.msra.mxu0 0.0
    %1588 = vmatprep.subr.mxu0 0.0
    %1589 = vmatpush1.xpose.msra.mxu0 0.0
    %1590 = vmatprep.subr.mxu0 0.0
    %1591 = vmatpush1.xpose.msra.mxu0 0.0
    %1592 = vmatprep.subr.mxu0 0.0
    %1593 = vmatpush1.xpose.msra.mxu0 %v1562
    %1594 = vmatprep.subr.mxu0 0.0
    %1595 = vmatpush1.xpose.msra.mxu0 %v1560
    %1596 = vmatprep.subr.mxu0 0.0
    %1597 = vmatpush2.xpose.msra.mxu0 0.0
    %1598 = vmatprep.subr.mxu0 0.0
    %1599 = vmatpush2.xpose.msra.mxu0 0.0
    %1600 = vmatprep.subr.mxu0 0.0
    %1601 = vmatpush2.xpose.msra.mxu0 0.0
    %1602 = vmatprep.subr.mxu0 0.0
    %1603 = vmatpush2.xpose.msra.mxu0 0.0
    %1604 = vmatprep.subr.mxu0 0.0
    %1605 = vmatpush2.xpose.msra.mxu0 0.0
    %1606 = vmatprep.subr.mxu0 0.0
    %1607 = vmatpush2.xpose.msra.mxu0 0.0
    %1608 = vmatprep.subr.mxu0 0.0
    %1609 = vmatpush2.xpose.msra.mxu0 0.0
    %1610 = vmatprep.subr.mxu0 0.0
    %1611 = vmatpush2.xpose.msra.mxu0 0.0
    %1612 = vmatprep.subr.mxu0 0.0
    %1613 = vmatpush2.xpose.msra.mxu0 0.0
    %1614 = vmatprep.subr.mxu0 0.0
    %1615 = vmatpush2.xpose.msra.mxu0 0.0
    %1616 = vmatprep.subr.mxu0 0.0
    %1617 = vmatpush2.xpose.msra.mxu0 0.0
    %1618 = vmatprep.subr.mxu0 0.0
    %1619 = vmatpush2.xpose.msra.mxu0 0.0
    %1620 = vmatprep.subr.mxu0 0.0
    %1621 = vmatpush2.xpose.msra.mxu0 0.0
    %1622 = vmatprep.subr.mxu0 0.0
    %1623 = vmatpush2.xpose.msra.mxu0 0.0
    %1624 = vmatprep.subr.mxu0 0.0
    %1625 = vmatpush2.xpose.msra.mxu0 0.0
    %1626 = vmatprep.subr.mxu0 0.0
    %1627 = vmatpush2.xpose.msra.mxu0 0.0
    %1628 = vmatprep.mubr.f32.mxu0 0.0
    %1629 = vmatmul.mubr.f32.gmra.mxu0 %v1556
    %v1630 = vpop.f32.mrf.mxu0
    %v1631 = vadd.f32 0.0, %v1630
    %v1632 = vpop.f32.mrf.mxu0
    %1633 = vmatprep.mubr.f32.mxu0 0.0
    %1634 = vmatmul.mubr.f32.gmra.mxu0 %v1558
    %v1635 = vpop.f32.mrf.mxu0
    %v1636 = vadd.f32 0.0, %v1635
    %v1637 = vpop.f32.mrf.mxu0
    %1638 = vdwg.mxu0
    %v1639 = vsel %vm434, %v1540, -inf
    %1640 = vmax.xlane.f32.xlu0 %v1639
    %v1641 = vpop.xlane.xlu0 %1640
    %v1642 = vsel %vm434, %v1545, -inf
    %1643 = vmax.xlane.f32.xlu0 %v1642
    %v1644 = vpop.xlane.xlu0 %1643
    %v1645 = vsel %vm434, %v1631, -inf
    %1646 = vmax.xlane.f32.xlu0 %v1645
    %v1647 = vpop.xlane.xlu0 %1646
    %v1648 = vsel %vm434, %v1636, -inf
    %1649 = vmax.xlane.f32.xlu0 %v1648
    %v1650 = vpop.xlane.xlu0 %1649
    %v1651 = vsub.f32 %v1540, %v1641
    %v1652 = vsub.f32 %v1545, %v1644
    %v1653 = vsub.f32 %v1631, %v1647
    %v1654 = vsub.f32 %v1636, %v1650
    %v1655 = vmul.f32 %v1651, 1.442695
    %v1656 = vpow.pop %v1655
    %v1657 = vmul.f32 %v1652, 1.442695
    %v1658 = vpow.pop %v1657
    %v1659 = vmul.f32 %v1653, 1.442695
    %v1660 = vpow.pop %v1659
    %v1661 = vmul.f32 %v1654, 1.442695
    %v1662 = vpow.pop %v1661
    %v1663 = vsel %vm434, %v1656, 0.0
    %1664 = vadd.xlane.f32.xlu0 %v1663
    %v1665 = vpop.xlane.xlu0 %1664
    %v1666 = vsel %vm434, %v1658, 0.0
    %1667 = vadd.xlane.f32.xlu0 %v1666
    %v1668 = vpop.xlane.xlu0 %1667
    %v1669 = vsel %vm434, %v1660, 0.0
    %1670 = vadd.xlane.f32.xlu0 %v1669
    %v1671 = vpop.xlane.xlu0 %1670
    %v1672 = vsel %vm434, %v1662, 0.0
    %1673 = vadd.xlane.f32.xlu0 %v1672
    %v1674 = vpop.xlane.xlu0 %1673
    %v1675 = vrcp.pop %v1665
    %v1676 = vrcp.pop %v1668
    %v1677 = vrcp.pop %v1671
    %v1678 = vrcp.pop %v1674
    %v1679 = vmul.f32 %v1656, %v1675
    %v1680 = vmul.f32 %v1658, %v1676
    %v1681 = vmul.f32 %v1660, %v1677
    %v1682 = vmul.f32 %v1662, %v1678
    %1683 = vrot.lane.b32.xlu0 %v251, 40
    %v1684 = vpop.permute.xlu0 %1683
    %1685 = vrot.lane.b32.xlu0 %v252, 40
    %v1686 = vpop.permute.xlu0 %1685
    %v1690 = vsel %vm434, %v1679, 0
    %v1693 = vsel %vm434, %v1680, 0
    %1695 = vmatprep.subr.mxu0 0.0
    %1696 = vmatpush1.msra.mxu0 0.0
    %1697 = vmatprep.subr.mxu0 0.0
    %1698 = vmatpush1.msra.mxu0 0.0
    %1699 = vmatprep.subr.mxu0 0.0
    %1700 = vmatpush1.msra.mxu0 0.0
    %1701 = vmatprep.subr.mxu0 0.0
    %1702 = vmatpush1.msra.mxu0 0.0
    %1703 = vmatprep.subr.mxu0 0.0
    %1704 = vmatpush1.msra.mxu0 0.0
    %1705 = vmatprep.subr.mxu0 0.0
    %1706 = vmatpush1.msra.mxu0 0.0
    %1707 = vmatprep.subr.mxu0 0.0
    %1708 = vmatpush1.msra.mxu0 0.0
    %1709 = vmatprep.subr.mxu0 0.0
    %1710 = vmatpush1.msra.mxu0 0.0
    %1711 = vmatprep.subr.mxu0 0.0
    %1712 = vmatpush1.msra.mxu0 0.0
    %1713 = vmatprep.subr.mxu0 0.0
    %1714 = vmatpush1.msra.mxu0 0.0
    %1715 = vmatprep.subr.mxu0 0.0
    %1716 = vmatpush1.msra.mxu0 0.0
    %1717 = vmatprep.subr.mxu0 0.0
    %1718 = vmatpush1.msra.mxu0 0.0
    %1719 = vmatprep.subr.mxu0 0.0
    %1720 = vmatpush1.msra.mxu0 0.0
    %1721 = vmatprep.subr.mxu0 0.0
    %1722 = vmatpush1.msra.mxu0 0.0
    %1723 = vmatprep.subr.mxu0 0.0
    %1724 = vmatpush1.msra.mxu0 %v1686
    %1725 = vmatprep.subr.mxu0 0.0
    %1726 = vmatpush1.msra.mxu0 %v1684
    %1727 = vmatprep.subr.mxu0 0.0
    %1728 = vmatpush2.msra.mxu0 0.0
    %1729 = vmatprep.subr.mxu0 0.0
    %1730 = vmatpush2.msra.mxu0 0.0
    %1731 = vmatprep.subr.mxu0 0.0
    %1732 = vmatpush2.msra.mxu0 0.0
    %1733 = vmatprep.subr.mxu0 0.0
    %1734 = vmatpush2.msra.mxu0 0.0
    %1735 = vmatprep.subr.mxu0 0.0
    %1736 = vmatpush2.msra.mxu0 0.0
    %1737 = vmatprep.subr.mxu0 0.0
    %1738 = vmatpush2.msra.mxu0 0.0
    %1739 = vmatprep.subr.mxu0 0.0
    %1740 = vmatpush2.msra.mxu0 0.0
    %1741 = vmatprep.subr.mxu0 0.0
    %1742 = vmatpush2.msra.mxu0 0.0
    %1743 = vmatprep.subr.mxu0 0.0
    %1744 = vmatpush2.msra.mxu0 0.0
    %1745 = vmatprep.subr.mxu0 0.0
    %1746 = vmatpush2.msra.mxu0 0.0
    %1747 = vmatprep.subr.mxu0 0.0
    %1748 = vmatpush2.msra.mxu0 0.0
    %1749 = vmatprep.subr.mxu0 0.0
    %1750 = vmatpush2.msra.mxu0 0.0
    %1751 = vmatprep.subr.mxu0 0.0
    %1752 = vmatpush2.msra.mxu0 0.0
    %1753 = vmatprep.subr.mxu0 0.0
    %1754 = vmatpush2.msra.mxu0 0.0
    %1755 = vmatprep.subr.mxu0 0.0
    %1756 = vmatpush2.msra.mxu0 0.0
    %1757 = vmatprep.subr.mxu0 0.0
    %1758 = vmatpush2.msra.mxu0 0.0
    %1759 = vmatprep.mubr.f32.mxu0 0.0
    %1760 = vmatmul.mubr.f32.gmra.mxu0 %v1690
    %v1761 = vpop.f32.mrf.mxu0
    %v1762 = vadd.f32 0.0, %v1761
    %v1763 = vpop.f32.mrf.mxu0
    %1764 = vmatprep.mubr.f32.mxu0 0.0
    %1765 = vmatmul.mubr.f32.gmra.mxu0 %v1693
    %v1766 = vpop.f32.mrf.mxu0
    %v1767 = vadd.f32 0.0, %v1766
    %v1768 = vpop.f32.mrf.mxu0
    %1769 = vdwg.mxu0
    %1770 = vrot.lane.b32.xlu0 %v253, 40
    %v1771 = vpop.permute.xlu0 %1770
    %1772 = vrot.lane.b32.xlu0 %v254, 40
    %v1773 = vpop.permute.xlu0 %1772
    %v1777 = vsel %vm434, %v1681, 0
    %v1780 = vsel %vm434, %v1682, 0
    %1782 = vmatprep.subr.mxu0 0.0
    %1783 = vmatpush1.msra.mxu0 0.0
    %1784 = vmatprep.subr.mxu0 0.0
    %1785 = vmatpush1.msra.mxu0 0.0
    %1786 = vmatprep.subr.mxu0 0.0
    %1787 = vmatpush1.msra.mxu0 0.0
    %1788 = vmatprep.subr.mxu0 0.0
    %1789 = vmatpush1.msra.mxu0 0.0
    %1790 = vmatprep.subr.mxu0 0.0
    %1791 = vmatpush1.msra.mxu0 0.0
    %1792 = vmatprep.subr.mxu0 0.0
    %1793 = vmatpush1.msra.mxu0 0.0
    %1794 = vmatprep.subr.mxu0 0.0
    %1795 = vmatpush1.msra.mxu0 0.0
    %1796 = vmatprep.subr.mxu0 0.0
    %1797 = vmatpush1.msra.mxu0 0.0
    %1798 = vmatprep.subr.mxu0 0.0
    %1799 = vmatpush1.msra.mxu0 0.0
    %1800 = vmatprep.subr.mxu0 0.0
    %1801 = vmatpush1.msra.mxu0 0.0
    %1802 = vmatprep.subr.mxu0 0.0
    %1803 = vmatpush1.msra.mxu0 0.0
    %1804 = vmatprep.subr.mxu0 0.0
    %1805 = vmatpush1.msra.mxu0 0.0
    %1806 = vmatprep.subr.mxu0 0.0
    %1807 = vmatpush1.msra.mxu0 0.0
    %1808 = vmatprep.subr.mxu0 0.0
    %1809 = vmatpush1.msra.mxu0 0.0
    %1810 = vmatprep.subr.mxu0 0.0
    %1811 = vmatpush1.msra.mxu0 %v1773
    %1812 = vmatprep.subr.mxu0 0.0
    %1813 = vmatpush1.msra.mxu0 %v1771
    %1814 = vmatprep.subr.mxu0 0.0
    %1815 = vmatpush2.msra.mxu0 0.0
    %1816 = vmatprep.subr.mxu0 0.0
    %1817 = vmatpush2.msra.mxu0 0.0
    %1818 = vmatprep.subr.mxu0 0.0
    %1819 = vmatpush2.msra.mxu0 0.0
    %1820 = vmatprep.subr.mxu0 0.0
    %1821 = vmatpush2.msra.mxu0 0.0
    %1822 = vmatprep.subr.mxu0 0.0
    %1823 = vmatpush2.msra.mxu0 0.0
    %1824 = vmatprep.subr.mxu0 0.0
    %1825 = vmatpush2.msra.mxu0 0.0
    %1826 = vmatprep.subr.mxu0 0.0
    %1827 = vmatpush2.msra.mxu0 0.0
    %1828 = vmatprep.subr.mxu0 0.0
    %1829 = vmatpush2.msra.mxu0 0.0
    %1830 = vmatprep.subr.mxu0 0.0
    %1831 = vmatpush2.msra.mxu0 0.0
    %1832 = vmatprep.subr.mxu0 0.0
    %1833 = vmatpush2.msra.mxu0 0.0
    %1834 = vmatprep.subr.mxu0 0.0
    %1835 = vmatpush2.msra.mxu0 0.0
    %1836 = vmatprep.subr.mxu0 0.0
    %1837 = vmatpush2.msra.mxu0 0.0
    %1838 = vmatprep.subr.mxu0 0.0
    %1839 = vmatpush2.msra.mxu0 0.0
    %1840 = vmatprep.subr.mxu0 0.0
    %1841 = vmatpush2.msra.mxu0 0.0
    %1842 = vmatprep.subr.mxu0 0.0
    %1843 = vmatpush2.msra.mxu0 0.0
    %1844 = vmatprep.subr.mxu0 0.0
    %1845 = vmatpush2.msra.mxu0 0.0
    %1846 = vmatprep.mubr.f32.mxu0 0.0
    %1847 = vmatmul.mubr.f32.gmra.mxu0 %v1777
    %v1848 = vpop.f32.mrf.mxu0
    %v1849 = vadd.f32 0.0, %v1848
    %v1850 = vpop.f32.mrf.mxu0
    %1851 = vmatprep.mubr.f32.mxu0 0.0
    %1852 = vmatmul.mubr.f32.gmra.mxu0 %v1780
    %v1853 = vpop.f32.mrf.mxu0
    %v1854 = vadd.f32 0.0, %v1853
    %v1855 = vpop.f32.mrf.mxu0
    %1856 = vdwg.mxu0
    %1861 = vrot.lane.b32.xlu0 %v962, 8
    %v1862 = vpop.permute.xlu0 %1861
    %1863 = vrot.lane.b32.xlu0 %v967, 8
    %v1864 = vpop.permute.xlu0 %1863
    %1865 = vrot.lane.b32.xlu0 %v1049, 8
    %v1866 = vpop.permute.xlu0 %1865
    %1867 = vrot.lane.b32.xlu0 %v1054, 8
    %v1868 = vpop.permute.xlu0 %1867
    %1877 = vrot.lane.b32.xlu0 %v1362, 16
    %v1878 = vpop.permute.xlu0 %1877
    %1879 = vrot.lane.b32.xlu0 %v1367, 16
    %v1880 = vpop.permute.xlu0 %1879
    %1881 = vrot.lane.b32.xlu0 %v1449, 16
    %v1882 = vpop.permute.xlu0 %1881
    %1883 = vrot.lane.b32.xlu0 %v1454, 16
    %v1884 = vpop.permute.xlu0 %1883
    %1893 = vrot.lane.b32.xlu0 %v1762, 24
    %v1894 = vpop.permute.xlu0 %1893
    %1895 = vrot.lane.b32.xlu0 %v1767, 24
    %v1896 = vpop.permute.xlu0 %1895
    %1897 = vrot.lane.b32.xlu0 %v1849, 24
    %v1898 = vpop.permute.xlu0 %1897
    %1899 = vrot.lane.b32.xlu0 %v1854, 24
    %v1900 = vpop.permute.xlu0 %1899
    %v1905 = vsel %vm261, %v560, %v1862
    %v1906 = vsel %vm261, %v565, %v1864
    %v1907 = vsel %vm261, %v649, %v1866
    %v1908 = vsel %vm261, %v654, %v1868
    %v1909 = vsel %vm434, %v1905, %v1878
    %v1910 = vsel %vm434, %v1906, %v1880
    %v1911 = vsel %vm434, %v1907, %v1882
    %v1912 = vsel %vm434, %v1908, %v1884
    %vm1913 = vcmask 195584
    %v1914 = vsel %vm1913, %v1909, %v1894
    %v1915 = vsel %vm1913, %v1910, %v1896
    %v1916 = vsel %vm1913, %v1911, %v1898
    %v1917 = vsel %vm1913, %v1912, %v1900
    %v1919 = vlaneseq
    %v1920 = vshrl.u32 %v1919, 7
    %v1921 = vsub.s32 0, %v1920
    %v1922 = vrot.slane %v104, %v1921
    %v1925 = vsel %vm111, %v1914, 0
    %v1928 = vsel %vm111, %v1915, 0
    %v1931 = vsel %vm111, %v1916, 0
    %v1934 = vsel %vm111, %v1917, 0
    %1936 = vmatprep.subr.mxu0 0.0
    %1937 = vmatpush1.msra.mxu0 0.0
    %1938 = vmatprep.subr.mxu0 0.0
    %1939 = vmatpush1.msra.mxu0 0.0
    %1940 = vmatprep.subr.mxu0 0.0
    %1941 = vmatpush1.msra.mxu0 0.0
    %1942 = vmatprep.subr.mxu0 0.0
    %1943 = vmatpush1.msra.mxu0 0.0
    %1944 = vmatprep.subr.mxu0 0.0
    %1945 = vmatpush1.msra.mxu0 0.0
    %1946 = vmatprep.subr.mxu0 0.0
    %1947 = vmatpush1.msra.mxu0 0.0
    %1948 = vmatprep.subr.mxu0 0.0
    %1949 = vmatpush1.msra.mxu0 0.0
    %1950 = vmatprep.subr.mxu0 0.0
    %1951 = vmatpush1.msra.mxu0 0.0
    %1952 = vmatprep.subr.mxu0 0.0
    %1953 = vmatpush1.msra.mxu0 0.0
    %1954 = vmatprep.subr.mxu0 0.0
    %1955 = vmatpush1.msra.mxu0 0.0
    %1956 = vmatprep.subr.mxu0 0.0
    %1957 = vmatpush1.msra.mxu0 0.0
    %1958 = vmatprep.subr.mxu0 0.0
    %1959 = vmatpush1.msra.mxu0 0.0
    %1960 = vmatprep.subr.mxu0 0.0
    %1961 = vmatpush1.msra.mxu0 %v90
    %1962 = vmatprep.subr.mxu0 0.0
    %1963 = vmatpush1.msra.mxu0 %v89
    %1964 = vmatprep.subr.mxu0 0.0
    %1965 = vmatpush1.msra.mxu0 %v88
    %1966 = vmatprep.subr.mxu0 0.0
    %1967 = vmatpush1.msra.mxu0 %v87
    %1968 = vmatprep.subr.mxu0 0.0
    %1969 = vmatpush2.msra.mxu0 0.0
    %1970 = vmatprep.subr.mxu0 0.0
    %1971 = vmatpush2.msra.mxu0 0.0
    %1972 = vmatprep.subr.mxu0 0.0
    %1973 = vmatpush2.msra.mxu0 0.0
    %1974 = vmatprep.subr.mxu0 0.0
    %1975 = vmatpush2.msra.mxu0 0.0
    %1976 = vmatprep.subr.mxu0 0.0
    %1977 = vmatpush2.msra.mxu0 0.0
    %1978 = vmatprep.subr.mxu0 0.0
    %1979 = vmatpush2.msra.mxu0 0.0
    %1980 = vmatprep.subr.mxu0 0.0
    %1981 = vmatpush2.msra.mxu0 0.0
    %1982 = vmatprep.subr.mxu0 0.0
    %1983 = vmatpush2.msra.mxu0 0.0
    %1984 = vmatprep.subr.mxu0 0.0
    %1985 = vmatpush2.msra.mxu0 0.0
    %1986 = vmatprep.subr.mxu0 0.0
    %1987 = vmatpush2.msra.mxu0 0.0
    %1988 = vmatprep.subr.mxu0 0.0
    %1989 = vmatpush2.msra.mxu0 0.0
    %1990 = vmatprep.subr.mxu0 0.0
    %1991 = vmatpush2.msra.mxu0 0.0
    %1992 = vmatprep.subr.mxu0 0.0
    %1993 = vmatpush2.msra.mxu0 0.0
    %1994 = vmatprep.subr.mxu0 0.0
    %1995 = vmatpush2.msra.mxu0 0.0
    %1996 = vmatprep.subr.mxu0 0.0
    %1997 = vmatpush2.msra.mxu0 0.0
    %1998 = vmatprep.subr.mxu0 0.0
    %1999 = vmatpush2.msra.mxu0 0.0
    %2000 = vmatprep.mubr.f32.mxu0 0.0
    %2001 = vmatmul.mubr.f32.gmra.mxu0 %v1925
    %v2002 = vpop.f32.mrf.mxu0
    %v2003 = vadd.f32 %v1922, %v2002
    %v2004 = vpop.f32.mrf.mxu0
    %2005 = vmatprep.mubr.f32.mxu0 0.0
    %2006 = vmatmul.mubr.f32.gmra.mxu0 %v1928
    %v2007 = vpop.f32.mrf.mxu0
    %v2008 = vadd.f32 %v1922, %v2007
    %v2009 = vpop.f32.mrf.mxu0
    %2010 = vmatprep.mubr.f32.mxu0 0.0
    %2011 = vmatmul.mubr.f32.gmra.mxu0 %v1931
    %v2012 = vpop.f32.mrf.mxu0
    %v2013 = vadd.f32 %v1922, %v2012
    %v2014 = vpop.f32.mrf.mxu0
    %2015 = vmatprep.mubr.f32.mxu0 0.0
    %2016 = vmatmul.mubr.f32.gmra.mxu0 %v1934
    %v2017 = vpop.f32.mrf.mxu0
    %v2018 = vadd.f32 %v1922, %v2017
    %v2019 = vpop.f32.mrf.mxu0
    %2020 = vdwg.mxu0
    %v2021 = vadd.f32 %v71, %v2003
    %v2022 = vadd.f32 %v72, %v2008
    %v2023 = vadd.f32 %v73, %v2013
    %v2024 = vadd.f32 %v74, %v2018
    %v2025 = vsel %vm111, %v2021, 0.0
    %2026 = vadd.xlane.f32.xlu0 %v2025
    %v2027 = vpop.xlane.xlu0 %2026
    %v2028 = vsel %vm111, %v2022, 0.0
    %2029 = vadd.xlane.f32.xlu0 %v2028
    %v2030 = vpop.xlane.xlu0 %2029
    %v2031 = vsel %vm111, %v2023, 0.0
    %2032 = vadd.xlane.f32.xlu0 %v2031
    %v2033 = vpop.xlane.xlu0 %2032
    %v2034 = vsel %vm111, %v2024, 0.0
    %2035 = vadd.xlane.f32.xlu0 %v2034
    %v2036 = vpop.xlane.xlu0 %2035
    %v2037 = vrcp.pop 32.0
    %v2038 = vmul.f32 %v2027, %v2037
    %v2039 = vmul.f32 %v2030, %v2037
    %v2040 = vmul.f32 %v2033, %v2037
    %v2041 = vmul.f32 %v2036, %v2037
    %v2042 = vsub.f32 %v2021, %v2038
    %v2043 = vsub.f32 %v2022, %v2039
    %v2044 = vsub.f32 %v2023, %v2040
    %v2045 = vsub.f32 %v2024, %v2041
    %v2046 = vmul.f32 %v2042, %v2042
    %v2047 = vmul.f32 %v2043, %v2043
    %v2048 = vmul.f32 %v2044, %v2044
    %v2049 = vmul.f32 %v2045, %v2045
    %v2050 = vsel %vm111, %v2046, 0.0
    %2051 = vadd.xlane.f32.xlu0 %v2050
    %v2052 = vpop.xlane.xlu0 %2051
    %v2053 = vsel %vm111, %v2047, 0.0
    %2054 = vadd.xlane.f32.xlu0 %v2053
    %v2055 = vpop.xlane.xlu0 %2054
    %v2056 = vsel %vm111, %v2048, 0.0
    %2057 = vadd.xlane.f32.xlu0 %v2056
    %v2058 = vpop.xlane.xlu0 %2057
    %v2059 = vsel %vm111, %v2049, 0.0
    %2060 = vadd.xlane.f32.xlu0 %v2059
    %v2061 = vpop.xlane.xlu0 %2060
    %v2062 = vmul.f32 %v2052, %v2037
    %v2063 = vmul.f32 %v2055, %v2037
    %v2064 = vmul.f32 %v2058, %v2037
    %v2065 = vmul.f32 %v2061, %v2037
    %v2066 = vadd.f32 %v2062, 1e-05
    %v2067 = vadd.f32 %v2063, 1e-05
    %v2068 = vadd.f32 %v2064, 1e-05
    %v2069 = vadd.f32 %v2065, 1e-05
    %v2070 = vrsqrt.pop %v2066
    %v2071 = vrsqrt.pop %v2067
    %v2072 = vrsqrt.pop %v2068
    %v2073 = vrsqrt.pop %v2069
    %v2074 = vmul.f32 %v2042, %v2070
    %v2075 = vmul.f32 %v2043, %v2071
    %v2076 = vmul.f32 %v2044, %v2072
    %v2077 = vmul.f32 %v2045, %v2073
    %v2079 = vlaneseq
    %v2080 = vshrl.u32 %v2079, 7
    %v2081 = vsub.s32 0, %v2080
    %v2082 = vrot.slane %v105, %v2081
    %v2084 = vmul.f32 %v2074, %v2082
    %v2085 = vmul.f32 %v2075, %v2082
    %v2086 = vmul.f32 %v2076, %v2082
    %v2087 = vmul.f32 %v2077, %v2082
    %v2089 = vlaneseq
    %v2090 = vshrl.u32 %v2089, 7
    %v2091 = vsub.s32 0, %v2090
    %v2092 = vrot.slane %v106, %v2091
    %v2094 = vadd.f32 %v2084, %v2092
    %v2095 = vadd.f32 %v2085, %v2092
    %v2096 = vadd.f32 %v2086, %v2092
    %v2097 = vadd.f32 %v2087, %v2092
    %v2099 = vlaneseq
    %v2100 = vshrl.u32 %v2099, 7
    %v2101 = vsub.s32 0, %v2100
    %v2102 = vrot.slane %v107, %v2101
    %v2105 = vsel %vm111, %v2094, 0
    %v2108 = vsel %vm111, %v2095, 0
    %v2111 = vsel %vm111, %v2096, 0
    %v2114 = vsel %vm111, %v2097, 0
    %2116 = vmatprep.subr.mxu0 0.0
    %2117 = vmatpush1.msra.mxu0 0.0
    %2118 = vmatprep.subr.mxu0 0.0
    %2119 = vmatpush1.msra.mxu0 0.0
    %2120 = vmatprep.subr.mxu0 0.0
    %2121 = vmatpush1.msra.mxu0 0.0
    %2122 = vmatprep.subr.mxu0 0.0
    %2123 = vmatpush1.msra.mxu0 0.0
    %2124 = vmatprep.subr.mxu0 0.0
    %2125 = vmatpush1.msra.mxu0 0.0
    %2126 = vmatprep.subr.mxu0 0.0
    %2127 = vmatpush1.msra.mxu0 0.0
    %2128 = vmatprep.subr.mxu0 0.0
    %2129 = vmatpush1.msra.mxu0 0.0
    %2130 = vmatprep.subr.mxu0 0.0
    %2131 = vmatpush1.msra.mxu0 0.0
    %2132 = vmatprep.subr.mxu0 0.0
    %2133 = vmatpush1.msra.mxu0 0.0
    %2134 = vmatprep.subr.mxu0 0.0
    %2135 = vmatpush1.msra.mxu0 0.0
    %2136 = vmatprep.subr.mxu0 0.0
    %2137 = vmatpush1.msra.mxu0 0.0
    %2138 = vmatprep.subr.mxu0 0.0
    %2139 = vmatpush1.msra.mxu0 0.0
    %2140 = vmatprep.subr.mxu0 0.0
    %2141 = vmatpush1.msra.mxu0 %v94
    %2142 = vmatprep.subr.mxu0 0.0
    %2143 = vmatpush1.msra.mxu0 %v93
    %2144 = vmatprep.subr.mxu0 0.0
    %2145 = vmatpush1.msra.mxu0 %v92
    %2146 = vmatprep.subr.mxu0 0.0
    %2147 = vmatpush1.msra.mxu0 %v91
    %2148 = vmatprep.subr.mxu0 0.0
    %2149 = vmatpush2.msra.mxu0 0.0
    %2150 = vmatprep.subr.mxu0 0.0
    %2151 = vmatpush2.msra.mxu0 0.0
    %2152 = vmatprep.subr.mxu0 0.0
    %2153 = vmatpush2.msra.mxu0 0.0
    %2154 = vmatprep.subr.mxu0 0.0
    %2155 = vmatpush2.msra.mxu0 0.0
    %2156 = vmatprep.subr.mxu0 0.0
    %2157 = vmatpush2.msra.mxu0 0.0
    %2158 = vmatprep.subr.mxu0 0.0
    %2159 = vmatpush2.msra.mxu0 0.0
    %2160 = vmatprep.subr.mxu0 0.0
    %2161 = vmatpush2.msra.mxu0 0.0
    %2162 = vmatprep.subr.mxu0 0.0
    %2163 = vmatpush2.msra.mxu0 0.0
    %2164 = vmatprep.subr.mxu0 0.0
    %2165 = vmatpush2.msra.mxu0 0.0
    %2166 = vmatprep.subr.mxu0 0.0
    %2167 = vmatpush2.msra.mxu0 0.0
    %2168 = vmatprep.subr.mxu0 0.0
    %2169 = vmatpush2.msra.mxu0 0.0
    %2170 = vmatprep.subr.mxu0 0.0
    %2171 = vmatpush2.msra.mxu0 0.0
    %2172 = vmatprep.subr.mxu0 0.0
    %2173 = vmatpush2.msra.mxu0 0.0
    %2174 = vmatprep.subr.mxu0 0.0
    %2175 = vmatpush2.msra.mxu0 0.0
    %2176 = vmatprep.subr.mxu0 0.0
    %2177 = vmatpush2.msra.mxu0 0.0
    %2178 = vmatprep.subr.mxu0 0.0
    %2179 = vmatpush2.msra.mxu0 0.0
    %2180 = vmatprep.mubr.f32.mxu0 0.0
    %2181 = vmatmul.mubr.f32.gmra.mxu0 %v2105
    %v2182 = vpop.f32.mrf.mxu0
    %v2183 = vadd.f32 %v2102, %v2182
    %v2184 = vpop.f32.mrf.mxu0
    %2185 = vmatprep.mubr.f32.mxu0 0.0
    %2186 = vmatmul.mubr.f32.gmra.mxu0 %v2108
    %v2187 = vpop.f32.mrf.mxu0
    %v2188 = vadd.f32 %v2102, %v2187
    %v2189 = vpop.f32.mrf.mxu0
    %2190 = vmatprep.mubr.f32.mxu0 0.0
    %2191 = vmatmul.mubr.f32.gmra.mxu0 %v2111
    %v2192 = vpop.f32.mrf.mxu0
    %v2193 = vadd.f32 %v2102, %v2192
    %v2194 = vpop.f32.mrf.mxu0
    %2195 = vmatprep.mubr.f32.mxu0 0.0
    %2196 = vmatmul.mubr.f32.gmra.mxu0 %v2114
    %v2197 = vpop.f32.mrf.mxu0
    %v2198 = vadd.f32 %v2102, %v2197
    %v2199 = vpop.f32.mrf.mxu0
    %2200 = vdwg.mxu0
    %v2201 = vmax.f32 %v2183, 0.0
    %v2202 = vmax.f32 %v2188, 0.0
    %v2203 = vmax.f32 %v2193, 0.0
    %v2204 = vmax.f32 %v2198, 0.0
    %v2206 = vlaneseq
    %v2207 = vshrl.u32 %v2206, 7
    %v2208 = vsub.s32 0, %v2207
    %v2209 = vrot.slane %v108, %v2208
    %vm2211 = vcmask 523264
    %v2213 = vsel %vm2211, %v2201, 0
    %v2216 = vsel %vm2211, %v2202, 0
    %v2219 = vsel %vm2211, %v2203, 0
    %v2222 = vsel %vm2211, %v2204, 0
    %2224 = vmatprep.subr.mxu0 0.0
    %2225 = vmatpush1.msra.mxu0 0.0
    %2226 = vmatprep.subr.mxu0 0.0
    %2227 = vmatpush1.msra.mxu0 0.0
    %2228 = vmatprep.subr.mxu0 0.0
    %2229 = vmatpush1.msra.mxu0 0.0
    %2230 = vmatprep.subr.mxu0 0.0
    %2231 = vmatpush1.msra.mxu0 0.0
    %2232 = vmatprep.subr.mxu0 0.0
    %2233 = vmatpush1.msra.mxu0 0.0
    %2234 = vmatprep.subr.mxu0 0.0
    %2235 = vmatpush1.msra.mxu0 0.0
    %2236 = vmatprep.subr.mxu0 0.0
    %2237 = vmatpush1.msra.mxu0 0.0
    %2238 = vmatprep.subr.mxu0 0.0
    %2239 = vmatpush1.msra.mxu0 0.0
    %2240 = vmatprep.subr.mxu0 0.0
    %2241 = vmatpush1.msra.mxu0 %v102
    %2242 = vmatprep.subr.mxu0 0.0
    %2243 = vmatpush1.msra.mxu0 %v101
    %2244 = vmatprep.subr.mxu0 0.0
    %2245 = vmatpush1.msra.mxu0 %v100
    %2246 = vmatprep.subr.mxu0 0.0
    %2247 = vmatpush1.msra.mxu0 %v99
    %2248 = vmatprep.subr.mxu0 0.0
    %2249 = vmatpush1.msra.mxu0 %v98
    %2250 = vmatprep.subr.mxu0 0.0
    %2251 = vmatpush1.msra.mxu0 %v97
    %2252 = vmatprep.subr.mxu0 0.0
    %2253 = vmatpush1.msra.mxu0 %v96
    %2254 = vmatprep.subr.mxu0 0.0
    %2255 = vmatpush1.msra.mxu0 %v95
    %2256 = vmatprep.subr.mxu0 0.0
    %2257 = vmatpush2.msra.mxu0 0.0
    %2258 = vmatprep.subr.mxu0 0.0
    %2259 = vmatpush2.msra.mxu0 0.0
    %2260 = vmatprep.subr.mxu0 0.0
    %2261 = vmatpush2.msra.mxu0 0.0
    %2262 = vmatprep.subr.mxu0 0.0
    %2263 = vmatpush2.msra.mxu0 0.0
    %2264 = vmatprep.subr.mxu0 0.0
    %2265 = vmatpush2.msra.mxu0 0.0
    %2266 = vmatprep.subr.mxu0 0.0
    %2267 = vmatpush2.msra.mxu0 0.0
    %2268 = vmatprep.subr.mxu0 0.0
    %2269 = vmatpush2.msra.mxu0 0.0
    %2270 = vmatprep.subr.mxu0 0.0
    %2271 = vmatpush2.msra.mxu0 0.0
    %2272 = vmatprep.subr.mxu0 0.0
    %2273 = vmatpush2.msra.mxu0 0.0
    %2274 = vmatprep.subr.mxu0 0.0
    %2275 = vmatpush2.msra.mxu0 0.0
    %2276 = vmatprep.subr.mxu0 0.0
    %2277 = vmatpush2.msra.mxu0 0.0
    %2278 = vmatprep.subr.mxu0 0.0
    %2279 = vmatpush2.msra.mxu0 0.0
    %2280 = vmatprep.subr.mxu0 0.0
    %2281 = vmatpush2.msra.mxu0 0.0
    %2282 = vmatprep.subr.mxu0 0.0
    %2283 = vmatpush2.msra.mxu0 0.0
    %2284 = vmatprep.subr.mxu0 0.0
    %2285 = vmatpush2.msra.mxu0 0.0
    %2286 = vmatprep.subr.mxu0 0.0
    %2287 = vmatpush2.msra.mxu0 0.0
    %2288 = vmatprep.mubr.f32.mxu0 0.0
    %2289 = vmatmul.mubr.f32.gmra.mxu0 %v2213
    %v2290 = vpop.f32.mrf.mxu0
    %v2291 = vadd.f32 %v2209, %v2290
    %v2292 = vpop.f32.mrf.mxu0
    %2293 = vmatprep.mubr.f32.mxu0 0.0
    %2294 = vmatmul.mubr.f32.gmra.mxu0 %v2216
    %v2295 = vpop.f32.mrf.mxu0
    %v2296 = vadd.f32 %v2209, %v2295
    %v2297 = vpop.f32.mrf.mxu0
    %2298 = vmatprep.mubr.f32.mxu0 0.0
    %2299 = vmatmul.mubr.f32.gmra.mxu0 %v2219
    %v2300 = vpop.f32.mrf.mxu0
    %v2301 = vadd.f32 %v2209, %v2300
    %v2302 = vpop.f32.mrf.mxu0
    %2303 = vmatprep.mubr.f32.mxu0 0.0
    %2304 = vmatmul.mubr.f32.gmra.mxu0 %v2222
    %v2305 = vpop.f32.mrf.mxu0
    %v2306 = vadd.f32 %v2209, %v2305
    %v2307 = vpop.f32.mrf.mxu0
    %2308 = vdwg.mxu0
    %v2309 = vadd.f32 %v2094, %v2291
    %v2310 = vadd.f32 %v2095, %v2296
    %v2311 = vadd.f32 %v2096, %v2301
    %v2312 = vadd.f32 %v2097, %v2306
    %v2313 = vsel %vm111, %v2309, 0.0
    %2314 = vadd.xlane.f32.xlu0 %v2313
    %v2315 = vpop.xlane.xlu0 %2314
    %v2316 = vsel %vm111, %v2310, 0.0
    %2317 = vadd.xlane.f32.xlu0 %v2316
    %v2318 = vpop.xlane.xlu0 %2317
    %v2319 = vsel %vm111, %v2311, 0.0
    %2320 = vadd.xlane.f32.xlu0 %v2319
    %v2321 = vpop.xlane.xlu0 %2320
    %v2322 = vsel %vm111, %v2312, 0.0
    %2323 = vadd.xlane.f32.xlu0 %v2322
    %v2324 = vpop.xlane.xlu0 %2323
    %v2325 = vmul.f32 %v2315, %v2037
    %v2326 = vmul.f32 %v2318, %v2037
    %v2327 = vmul.f32 %v2321, %v2037
    %v2328 = vmul.f32 %v2324, %v2037
    %v2329 = vsub.f32 %v2309, %v2325
    %v2330 = vsub.f32 %v2310, %v2326
    %v2331 = vsub.f32 %v2311, %v2327
    %v2332 = vsub.f32 %v2312, %v2328
    %v2333 = vmul.f32 %v2329, %v2329
    %v2334 = vmul.f32 %v2330, %v2330
    %v2335 = vmul.f32 %v2331, %v2331
    %v2336 = vmul.f32 %v2332, %v2332
    %v2337 = vsel %vm111, %v2333, 0.0
    %2338 = vadd.xlane.f32.xlu0 %v2337
    %v2339 = vpop.xlane.xlu0 %2338
    %v2340 = vsel %vm111, %v2334, 0.0
    %2341 = vadd.xlane.f32.xlu0 %v2340
    %v2342 = vpop.xlane.xlu0 %2341
    %v2343 = vsel %vm111, %v2335, 0.0
    %2344 = vadd.xlane.f32.xlu0 %v2343
    %v2345 = vpop.xlane.xlu0 %2344
    %v2346 = vsel %vm111, %v2336, 0.0
    %2347 = vadd.xlane.f32.xlu0 %v2346
    %v2348 = vpop.xlane.xlu0 %2347
    %v2349 = vmul.f32 %v2339, %v2037
    %v2350 = vmul.f32 %v2342, %v2037
    %v2351 = vmul.f32 %v2345, %v2037
    %v2352 = vmul.f32 %v2348, %v2037
    %v2353 = vadd.f32 %v2349, 1e-05
    %v2354 = vadd.f32 %v2350, 1e-05
    %v2355 = vadd.f32 %v2351, 1e-05
    %v2356 = vadd.f32 %v2352, 1e-05
    %v2357 = vrsqrt.pop %v2353
    %v2358 = vrsqrt.pop %v2354
    %v2359 = vrsqrt.pop %v2355
    %v2360 = vrsqrt.pop %v2356
    %v2361 = vmul.f32 %v2329, %v2357
    %v2362 = vmul.f32 %v2330, %v2358
    %v2363 = vmul.f32 %v2331, %v2359
    %v2364 = vmul.f32 %v2332, %v2360
    %v2366 = vlaneseq
    %v2367 = vshrl.u32 %v2366, 7
    %v2368 = vsub.s32 0, %v2367
    %v2369 = vrot.slane %v109, %v2368
    %v2371 = vmul.f32 %v2361, %v2369
    %v2372 = vmul.f32 %v2362, %v2369
    %v2373 = vmul.f32 %v2363, %v2369
    %v2374 = vmul.f32 %v2364, %v2369
    %v2376 = vlaneseq
    %v2377 = vshrl.u32 %v2376, 7
    %v2378 = vsub.s32 0, %v2377
    %v2379 = vrot.slane %v110, %v2378
    %v2381 = vadd.f32 %v2371, %v2379
    %v2382 = vadd.f32 %v2372, %v2379
    %v2383 = vadd.f32 %v2373, %v2379
    %v2384 = vadd.f32 %v2374, %v2379
    %2385 = vst.msk [vmem:[#allocation10] sm:$0xff] %vm111, %v2381
    %2386 = vst.msk [vmem:[#allocation10 + $0x8] sm:$0xff] %vm111, %v2382
    %2387 = vst.msk [vmem:[#allocation10 + $0x10] sm:$0xff] %vm111, %v2383
    %2388 = vst.msk [vmem:[#allocation10 + $0x18] sm:$0xff] %vm111, %v2384
    // Predicated region
    $region34: #{tpu_custom_call.1} parent=1 // pred_check
      _
    $region35: #{tpu_custom_call.1} parent=1 // pred_check_branch
      %2390 = sbr.rel (0) target = $region37
    $region36: #{tpu_custom_call.1} parent=1 // pred_region
      %s2392 = ssub.s32 512, 512
      %2393 = vsyncadd [#allocation4], %s2392
      %s2394 = sshll.u32 [#allocation10], 4
      %s2395 = int_to_ptr.vmem [resolvable:$true] %s2394
      %2400 = dma.vmem_to_hbm [thread:$0]  %s2395, 512, %s4, [#allocation4], 128, 128, 8
    $region37: #{tpu_custom_call.1} parent=1 // pred_fallthru
      _
    // Predicated region
    $region38: #{tpu_custom_call.1} parent=1 // pred_check
      _
    $region39: #{tpu_custom_call.1} parent=1 // pred_check_branch
      %2402 = sbr.rel (0) target = $region41
    $region40: #{tpu_custom_call.1} parent=1 // pred_region
      %2403 = dma.done [#allocation4], 512
    $region41: #{tpu_custom_call.1} parent=1 // pred_fallthru
      _
    %2404 = vsyncpa [#allocation3], 1
    %2405 = vsyncpa [#allocation6], 1
    %2406 = vsyncpa [#allocation9], 1
    %2407 = vsyncpa [#allocation4], 1

</llo_original>
